<compile_context>
chip_gen: v7x
topology: tpu7x:2x2x1
jax: 0.10.0
libtpu: 0.0.40
codegen_flags: <defaults>
</compile_context>

<pallas_src>
import functools
import numpy as np
import jax
import jax.numpy as jnp
from jax import lax
from jax.experimental import pallas as pl
from jax.experimental.pallas import tpu as pltpu

TWO_PI = 2.0 * np.pi
INV_TWO_PI = 1.0 / TWO_PI
LN2 = float(np.log(2.0))

# Module defaults (VocalOscillator.__init__ / forward(..., None)) baked in.
VIBRATO_RATE = 5.5
VIBRATO_DEPTH = 0.1
OPEN_QUOTIENT = 0.7
PHASE_COHERENCE = 0.5
BREATHINESS = 0.1
N_BANDS = 8
SPECTRAL_DECAY = 0.7
FORMANT_FREQS = (800.0, 1150.0, 2900.0, 3900.0)
FORMANT_BWS = (80.0, 90.0, 120.0, 130.0)
FORMANT_GAINS = (1.0, 0.5, 0.25, 0.1)


def _vocal_osc_kernel(fs, f0_ref, amp_ref, noise_ref, ip_ref,
                      L_ref, filt_ref, conv_ref, sig_ref, fphase_ref):
    f0 = f0_ref[...]            # (bt, T)
    noise = noise_ref[...]      # (bt, T)
    ip = ip_ref[...]            # (bt, 1)
    bt, T = f0.shape
    H = amp_ref.shape[0]        # amp_ref: (H, bt, T)

    inv_fs = 1.0 / fs
    nyquist = 0.5 * fs

    # ---------------- vibrato (constant defaults -> one shared (1, T) row) ----
    t = lax.broadcasted_iota(jnp.int32, (1, T), 1).astype(jnp.float32) * inv_fs
    vib_mult = jnp.exp(jnp.sin((TWO_PI * VIBRATO_RATE) * t) *
                       (VIBRATO_DEPTH * LN2 / 12.0))
    f0_vib = jnp.where(f0 > 0.0, f0 * vib_mult, f0)

    # ------------- phase accumulation: cumsum == matmul with upper-tri ones ---
    inc = (TWO_PI * inv_fs) * f0_vib                                        # (bt, T)
    phase = jnp.dot(inc, L_ref[...], preferred_element_type=jnp.float32) + ip

    # ------------- harmonics: coherence + anti-alias + glottal flow -----------
    # Unrolled over H so all in-kernel tensors stay 2-D (bt, T).
    harmonic = None
    for h in range(H):
        k = float(h + 1)
        ph = phase * k
        if h > 0:
            # Matches the torch reference: coherent phase for 0-based row h is
            # fundamental_phase * h (its harmonic_indices start at 1).
            ph = (PHASE_COHERENCE * (phase * float(h)) +
                  (1.0 - PHASE_COHERENCE) * ph)
        # remove_above_nyquist
        aa = (f0_vib * k < nyquist).astype(jnp.float32) + 1e-4
        # glottal flow with a single transcendental:
        #   sin^2(pi/2*r) = 0.5*(1 - cos(pi*r)), cos^2(pi/2*f) = 0.5*(1 + cos(pi*f))
        nphase = (ph - TWO_PI * jnp.floor(ph * INV_TWO_PI)) * INV_TWO_PI
        rising = nphase < OPEN_QUOTIENT
        arg = jnp.where(
            rising,
            nphase * (np.pi / OPEN_QUOTIENT),
            (nphase - OPEN_QUOTIENT) * (np.pi / (1.0 - OPEN_QUOTIENT)))
        flow = jnp.where(rising, -0.5, 0.5) * jnp.cos(arg)
        contrib = flow * (amp_ref[h] * aa)
        harmonic = contrib if harmonic is None else harmonic + contrib       # (bt, T)

    # ------------- formant filter: rFFT * resp * irFFT folded into (T, T) -----
    filtered = jnp.dot(harmonic, filt_ref[...],
                       preferred_element_type=jnp.float32)                   # (bt, T)

    # ------------- breath noise: 8 band smoothers + weights folded into (T, T)
    shaped = jnp.dot(noise, conv_ref[...],
                     preferred_element_type=jnp.float32)                     # (bt, T)
    mean = jnp.mean(shaped, axis=1, keepdims=True)
    var = jnp.sum((shaped - mean) ** 2, axis=1, keepdims=True) * (1.0 / (T - 1))
    norm_noise = (shaped - mean) / (jnp.sqrt(var) + 1e-8)
    scaled_noise = norm_noise * BREATHINESS

    # ------------- combine -----------------------------------------------------
    mask = (f0 > 0.0).astype(jnp.float32)
    sig_ref[...] = filtered * mask + scaled_noise

    fp = phase[:, T - 1:T]                                                    # (bt, 1)
    fphase_ref[...] = fp - TWO_PI * jnp.floor(fp * INV_TWO_PI)


def _build_constants(T, fs):
    """Precompute the three (T, T) f32 constant matrices (in float64)."""
    f64 = np.float64

    # phase cumsum: phase = inc @ L, L[s, t] = 1 for s <= t
    L = np.triu(np.ones((T, T), np.float32))

    # formant filter: rFFT -> Lorentzian formant response -> irFFT, folded.
    F = T // 2 + 1
    tt = np.arange(T, dtype=f64)[:, None]
    kk = np.arange(F, dtype=f64)[None, :]
    ang = 2.0 * np.pi * tt * kk / T                       # (T, F)
    cfwd = np.cos(ang)                                    # Re = x @ cfwd
    sfwd = -np.sin(ang)                                   # Im = x @ sfwd
    w = np.full((F,), 2.0, f64)
    w[0] = 1.0
    if T % 2 == 0:
        w[-1] = 1.0
    cinv = (w[:, None] * np.cos(ang.T)) / T               # (F, T)
    sinv = -(w[:, None] * np.sin(ang.T)) / T              # (F, T)

    freqs = np.arange(F, dtype=f64) * (fs / T)
    resp = np.zeros((F,), f64)
    for fc, bw, g in zip(FORMANT_FREQS, FORMANT_BWS, FORMANT_GAINS):
        resp += g / (1.0 + ((freqs - fc) / (bw * 0.5)) ** 2)
    filt = (cfwd * resp[None, :]) @ cinv + (sfwd * resp[None, :]) @ sinv  # (T, T)

    # breath-noise shaping: sum_i 0.7**i * conv1d_same(gauss_i), folded.
    conv = np.zeros((T, T), f64)
    s_idx = np.arange(T)[:, None]
    t_idx = np.arange(T)[None, :]
    for i in range(N_BANDS):
        smooth = 2.0 ** (i / 2.0)
        ks = max(3, int(128 / smooth))
        if ks % 2 == 0:
            ks += 1
        x = np.arange(-(ks // 2), ks // 2 + 1, dtype=f64)
        kern = np.exp(-x ** 2 / (2.0 * (ks / 6.0) ** 2))
        kern = kern / kern.sum()
        pad = ks // 2
        j = s_idx - t_idx + pad
        valid = (j >= 0) & (j < ks)
        band = np.where(valid, kern[np.clip(j, 0, ks - 1)], 0.0)
        conv += (SPECTRAL_DECAY ** i) * band

    return (L.astype(np.float32), filt.astype(np.float32),
            conv.astype(np.float32))


def vocal_oscillator(f0, amplitudes, fs=16000, noise_key=None, initial_phase=None):
    """VocalOscillator.forward with default (None) control parameters.

    Args:
      f0:         (B, T, 1) float32, Hz
      amplitudes: (B, T, H) float32
    Returns:
      signal:      (B, T)
      final_phase: (B, 1, 1)
    """
    f32 = jnp.float32
    B, T, _ = f0.shape
    H = amplitudes.shape[-1]
    if noise_key is None:
        noise_key = jax.random.PRNGKey(0)

    # ---- kernel-layout inputs: time on the 128-lane axis ----
    f0_bt = f0.astype(f32)[:, :, 0]                               # (B, T)
    amp_hbt = jnp.transpose(amplitudes.astype(f32), (2, 0, 1))    # (H, B, T)
    # TODO(synk): torch.randn has no bit-exact JAX equivalent; deterministic
    # jax.random.normal is used for the breath-noise source.
    noise = jax.random.normal(noise_key, (B, T), f32)
    if initial_phase is None:
        ip = jnp.zeros((B, 1), f32)
    else:
        ip = initial_phase.astype(f32).reshape(B, 1)

    L, filt, conv = (jnp.asarray(a) for a in _build_constants(T, float(fs)))

    # Batch tiling: one program handles up to 128 batch rows so the three
    # matmuls have M = batch tile (instead of M = 1).  Grid axis is parallel
    # (shards across v7x's two TensorCores; free on v5e/v6e).
    bt = B if B <= 128 else 128
    nb = -(-B // bt)
    B_pad = nb * bt
    if B_pad != B:
        padn = B_pad - B
        f0_bt = jnp.pad(f0_bt, ((0, padn), (0, 0)))
        amp_hbt = jnp.pad(amp_hbt, ((0, 0), (0, padn), (0, 0)))
        noise = jnp.pad(noise, ((0, padn), (0, 0)))
        ip = jnp.pad(ip, ((0, padn), (0, 0)))

    # VMEM budget: 3 resident (T, T) f32 constants (double-buffered by the
    # pipeliner) + per-tile activations, with headroom; clamped to stay under
    # v7x's 64 MiB physical VMEM.
    # TODO(synk): for very long T (>~2048) the (T, T) constants should be
    # K-tiled / streamed instead of held resident.
    const_bytes = 3 * T * T * 4
    act_bytes = bt * T * 4 * (H + 6)
    vmem_limit = int(min(max(2 * (const_bytes + act_bytes) + (4 << 20),
                             32 * 1024 * 1024),
                         56 * 1024 * 1024))

    kernel = functools.partial(_vocal_osc_kernel, float(fs))

    per_bt = pl.BlockSpec((bt, T), lambda b: (b, 0))
    per_b1 = pl.BlockSpec((bt, 1), lambda b: (b, 0))
    const_tt = pl.BlockSpec((T, T), lambda b: (0, 0))

    out_sig, out_phase = pl.pallas_call(
        kernel,
        grid=(nb,),
        in_specs=[
            per_bt,                                           # f0          (B, T)
            pl.BlockSpec((H, bt, T), lambda b: (0, b, 0)),    # amplitudes  (H, B, T)
            per_bt,                                           # noise       (B, T)
            per_b1,                                           # initial phase (B, 1)
            const_tt,                                         # L    (cumsum)
            const_tt,                                         # FILT (rFFT*resp*irFFT)
            const_tt,                                         # CONV (band smoothing)
        ],
        out_specs=[per_bt, per_b1],
        out_shape=(
            jax.ShapeDtypeStruct((B_pad, T), f32),
            jax.ShapeDtypeStruct((B_pad, 1), f32),
        ),
        compiler_params=pltpu.CompilerParams(
            dimension_semantics=("parallel",),
            vmem_limit_bytes=vmem_limit,
        ),
    )(f0_bt, amp_hbt, noise, ip, L, filt, conv)

    signal = out_sig[:B]
    final_phase = out_phase[:B].reshape(B, 1, 1)
    return signal, final_phase


if __name__ == "__main__":
    key = jax.random.PRNGKey(0)
    k1, k2, k3 = jax.random.split(key, 3)

    B, T, H = 2, 64, 8
    fs = 16000

    f0 = 100.0 + 100.0 * jax.random.uniform(k1, (B, T, 1), dtype=jnp.float32)
    f0 = f0.at[:, :4, :].set(0.0)  # a few unvoiced frames to exercise the mask path
    amplitudes = jax.random.uniform(k2, (B, T, H), dtype=jnp.float32)

    signal, final_phase = vocal_oscillator(f0, amplitudes, fs=fs, noise_key=k3)
    jax.block_until_ready((signal, final_phase))

    assert signal.shape == (B, T)
    assert final_phase.shape == (B, 1, 1)
    assert bool(jnp.all(jnp.isfinite(signal)))
    print("KERNEL_OK")
</pallas_src>

<mosaic_0001>
module attributes {stable_mosaic.version = 11 : i64} {
  func.func @_vocal_osc_kernel(%arg0: i32, %arg1: memref<2x64xf32, #tpu.memory_space<vmem>>, %arg2: memref<8x2x64xf32, #tpu.memory_space<vmem>>, %arg3: memref<2x64xf32, #tpu.memory_space<vmem>>, %arg4: memref<2x1xf32, #tpu.memory_space<vmem>>, %arg5: memref<64x64xf32, #tpu.memory_space<vmem>>, %arg6: memref<64x64xf32, #tpu.memory_space<vmem>>, %arg7: memref<64x64xf32, #tpu.memory_space<vmem>>, %arg8: memref<2x64xf32, #tpu.memory_space<vmem>>, %arg9: memref<2x1xf32, #tpu.memory_space<vmem>>) attributes {dimension_semantics = [#tpu.dimension_semantics<parallel>], iteration_bounds = array<i64: 1>, scalar_prefetch = 0 : i64, scratch_operands = 0 : i64, tpu.core_type = #tpu.core_type<tc>, window_params = [{transform_indices = @transform_0, window_bounds = array<i64: 2, 64>}, {transform_indices = @transform_1, window_bounds = array<i64: 8, 2, 64>}, {transform_indices = @transform_2, window_bounds = array<i64: 2, 64>}, {transform_indices = @transform_3, window_bounds = array<i64: 2, 1>}, {pipeline_mode = #tpu.pipeline_mode<synchronous>, transform_indices = @transform_4, window_bounds = array<i64: 64, 64>}, {pipeline_mode = #tpu.pipeline_mode<synchronous>, transform_indices = @transform_5, window_bounds = array<i64: 64, 64>}, {pipeline_mode = #tpu.pipeline_mode<synchronous>, transform_indices = @transform_6, window_bounds = array<i64: 64, 64>}, {transform_indices = @transform_7, window_bounds = array<i64: 2, 64>}, {transform_indices = @transform_8, window_bounds = array<i64: 2, 1>}]} {
    %c0 = arith.constant 0 : index
    %c0_0 = arith.constant 0 : index
    %0 = vector.load %arg1[%c0, %c0_0] : memref<2x64xf32, #tpu.memory_space<vmem>>, vector<2x64xf32>
    %c0_1 = arith.constant 0 : index
    %c0_2 = arith.constant 0 : index
    %1 = vector.load %arg3[%c0_1, %c0_2] : memref<2x64xf32, #tpu.memory_space<vmem>>, vector<2x64xf32>
    %c0_3 = arith.constant 0 : index
    %c0_4 = arith.constant 0 : index
    %2 = vector.load %arg4[%c0_3, %c0_4] : memref<2x1xf32, #tpu.memory_space<vmem>>, vector<2x1xf32>
    %3 = tpu.iota {dimensions = array<i32: 1>} : vector<1x64xi32>
    %4 = arith.sitofp %3 : vector<1x64xi32> to vector<1x64xf32>
    %cst = arith.constant 6.250000e-05 : f32
    %5 = vector.broadcast %cst : f32 to vector<1x64xf32>
    %6 = arith.mulf %4, %5 : vector<1x64xf32>
    %cst_5 = arith.constant 34.557518 : f32
    %7 = vector.broadcast %cst_5 : f32 to vector<1x64xf32>
    %8 = arith.mulf %7, %6 : vector<1x64xf32>
    %9 = math.sin %8 : vector<1x64xf32>
    %cst_6 = arith.constant 0.00577622652 : f32
    %10 = vector.broadcast %cst_6 : f32 to vector<1x64xf32>
    %11 = arith.mulf %9, %10 : vector<1x64xf32>
    %12 = math.exp %11 : vector<1x64xf32>
    %cst_7 = arith.constant 0.000000e+00 : f32
    %13 = vector.broadcast %cst_7 : f32 to vector<2x64xf32>
    %14 = arith.cmpf ogt, %0, %13 : vector<2x64xf32>
    %15 = vector.broadcast %12 : vector<1x64xf32> to vector<2x64xf32>
    %16 = arith.mulf %0, %15 : vector<2x64xf32>
    %17 = arith.select %14, %16, %0 : vector<2x64xi1>, vector<2x64xf32>
    %cst_8 = arith.constant 3.9269909E-4 : f32
    %18 = vector.broadcast %cst_8 : f32 to vector<2x64xf32>
    %19 = arith.mulf %18, %17 : vector<2x64xf32>
    %c0_9 = arith.constant 0 : index
    %c0_10 = arith.constant 0 : index
    %20 = vector.load %arg5[%c0_9, %c0_10] : memref<64x64xf32, #tpu.memory_space<vmem>>, vector<64x64xf32>
    %cst_11 = arith.constant dense<0.000000e+00> : vector<2x64xf32>
    %21 = tpu.matmul %19, %20, %cst_11 {dimension_numbers = #tpu.dot_dimension_numbers<[1], [0], [0], [1], [0, 0, 1, 1], [], []>} : vector<2x64xf32>, vector<64x64xf32>, vector<2x64xf32> -> vector<2x64xf32>
    %22 = vector.broadcast %2 : vector<2x1xf32> to vector<2x64xf32>
    %23 = arith.addf %21, %22 : vector<2x64xf32>
    %cst_12 = arith.constant 1.000000e+00 : f32
    %24 = vector.broadcast %cst_12 : f32 to vector<2x64xf32>
    %25 = arith.mulf %23, %24 : vector<2x64xf32>
    %cst_13 = arith.constant 1.000000e+00 : f32
    %26 = vector.broadcast %cst_13 : f32 to vector<2x64xf32>
    %27 = arith.mulf %17, %26 : vector<2x64xf32>
    %cst_14 = arith.constant 8.000000e+03 : f32
    %28 = vector.broadcast %cst_14 : f32 to vector<2x64xf32>
    %29 = arith.cmpf olt, %27, %28 : vector<2x64xf32>
    %30 = arith.extui %29 : vector<2x64xi1> to vector<2x64xi32>
    %31 = arith.sitofp %30 : vector<2x64xi32> to vector<2x64xf32>
    %cst_15 = arith.constant 9.99999974E-5 : f32
    %32 = vector.broadcast %cst_15 : f32 to vector<2x64xf32>
    %33 = arith.addf %31, %32 : vector<2x64xf32>
    %cst_16 = arith.constant 0.159154937 : f32
    %34 = vector.broadcast %cst_16 : f32 to vector<2x64xf32>
    %35 = arith.mulf %25, %34 : vector<2x64xf32>
    %36 = math.floor %35 : vector<2x64xf32>
    %cst_17 = arith.constant 6.28318548 : f32
    %37 = vector.broadcast %cst_17 : f32 to vector<2x64xf32>
    %38 = arith.mulf %37, %36 : vector<2x64xf32>
    %39 = arith.subf %25, %38 : vector<2x64xf32>
    %cst_18 = arith.constant 0.159154937 : f32
    %40 = vector.broadcast %cst_18 : f32 to vector<2x64xf32>
    %41 = arith.mulf %39, %40 : vector<2x64xf32>
    %cst_19 = arith.constant 0.699999988 : f32
    %42 = vector.broadcast %cst_19 : f32 to vector<2x64xf32>
    %43 = arith.cmpf olt, %41, %42 : vector<2x64xf32>
    %cst_20 = arith.constant 4.48798943 : f32
    %44 = vector.broadcast %cst_20 : f32 to vector<2x64xf32>
    %45 = arith.mulf %41, %44 : vector<2x64xf32>
    %cst_21 = arith.constant 0.699999988 : f32
    %46 = vector.broadcast %cst_21 : f32 to vector<2x64xf32>
    %47 = arith.subf %41, %46 : vector<2x64xf32>
    %cst_22 = arith.constant 10.4719753 : f32
    %48 = vector.broadcast %cst_22 : f32 to vector<2x64xf32>
    %49 = arith.mulf %47, %48 : vector<2x64xf32>
    %50 = arith.select %43, %45, %49 : vector<2x64xi1>, vector<2x64xf32>
    %cst_23 = arith.constant -5.000000e-01 : f32
    %cst_24 = arith.constant 5.000000e-01 : f32
    %51 = vector.broadcast %cst_23 : f32 to vector<2x64xf32>
    %52 = vector.broadcast %cst_24 : f32 to vector<2x64xf32>
    %53 = arith.select %43, %51, %52 : vector<2x64xi1>, vector<2x64xf32>
    %54 = math.cos %50 : vector<2x64xf32>
    %55 = arith.mulf %53, %54 : vector<2x64xf32>
    %c0_25 = arith.constant 0 : index
    %c0_26 = arith.constant 0 : index
    %c0_27 = arith.constant 0 : index
    %56 = vector.load %arg2[%c0_25, %c0_26, %c0_27] : memref<8x2x64xf32, #tpu.memory_space<vmem>>, vector<1x2x64xf32>
    %57 = vector.shape_cast %56 : vector<1x2x64xf32> to vector<2x64xf32>
    %58 = arith.mulf %57, %33 : vector<2x64xf32>
    %59 = arith.mulf %55, %58 : vector<2x64xf32>
    %cst_28 = arith.constant 2.000000e+00 : f32
    %60 = vector.broadcast %cst_28 : f32 to vector<2x64xf32>
    %61 = arith.mulf %23, %60 : vector<2x64xf32>
    %cst_29 = arith.constant 1.000000e+00 : f32
    %62 = vector.broadcast %cst_29 : f32 to vector<2x64xf32>
    %63 = arith.mulf %23, %62 : vector<2x64xf32>
    %cst_30 = arith.constant 5.000000e-01 : f32
    %64 = vector.broadcast %cst_30 : f32 to vector<2x64xf32>
    %65 = arith.mulf %64, %63 : vector<2x64xf32>
    %cst_31 = arith.constant 5.000000e-01 : f32
    %66 = vector.broadcast %cst_31 : f32 to vector<2x64xf32>
    %67 = arith.mulf %66, %61 : vector<2x64xf32>
    %68 = arith.addf %65, %67 : vector<2x64xf32>
    %cst_32 = arith.constant 2.000000e+00 : f32
    %69 = vector.broadcast %cst_32 : f32 to vector<2x64xf32>
    %70 = arith.mulf %17, %69 : vector<2x64xf32>
    %cst_33 = arith.constant 8.000000e+03 : f32
    %71 = vector.broadcast %cst_33 : f32 to vector<2x64xf32>
    %72 = arith.cmpf olt, %70, %71 : vector<2x64xf32>
    %73 = arith.extui %72 : vector<2x64xi1> to vector<2x64xi32>
    %74 = arith.sitofp %73 : vector<2x64xi32> to vector<2x64xf32>
    %cst_34 = arith.constant 9.99999974E-5 : f32
    %75 = vector.broadcast %cst_34 : f32 to vector<2x64xf32>
    %76 = arith.addf %74, %75 : vector<2x64xf32>
    %cst_35 = arith.constant 0.159154937 : f32
    %77 = vector.broadcast %cst_35 : f32 to vector<2x64xf32>
    %78 = arith.mulf %68, %77 : vector<2x64xf32>
    %79 = math.floor %78 : vector<2x64xf32>
    %cst_36 = arith.constant 6.28318548 : f32
    %80 = vector.broadcast %cst_36 : f32 to vector<2x64xf32>
    %81 = arith.mulf %80, %79 : vector<2x64xf32>
    %82 = arith.subf %68, %81 : vector<2x64xf32>
    %cst_37 = arith.constant 0.159154937 : f32
    %83 = vector.broadcast %cst_37 : f32 to vector<2x64xf32>
    %84 = arith.mulf %82, %83 : vector<2x64xf32>
    %cst_38 = arith.constant 0.699999988 : f32
    %85 = vector.broadcast %cst_38 : f32 to vector<2x64xf32>
    %86 = arith.cmpf olt, %84, %85 : vector<2x64xf32>
    %cst_39 = arith.constant 4.48798943 : f32
    %87 = vector.broadcast %cst_39 : f32 to vector<2x64xf32>
    %88 = arith.mulf %84, %87 : vector<2x64xf32>
    %cst_40 = arith.constant 0.699999988 : f32
    %89 = vector.broadcast %cst_40 : f32 to vector<2x64xf32>
    %90 = arith.subf %84, %89 : vector<2x64xf32>
    %cst_41 = arith.constant 10.4719753 : f32
    %91 = vector.broadcast %cst_41 : f32 to vector<2x64xf32>
    %92 = arith.mulf %90, %91 : vector<2x64xf32>
    %93 = arith.select %86, %88, %92 : vector<2x64xi1>, vector<2x64xf32>
    %cst_42 = arith.constant -5.000000e-01 : f32
    %cst_43 = arith.constant 5.000000e-01 : f32
    %94 = vector.broadcast %cst_42 : f32 to vector<2x64xf32>
    %95 = vector.broadcast %cst_43 : f32 to vector<2x64xf32>
    %96 = arith.select %86, %94, %95 : vector<2x64xi1>, vector<2x64xf32>
    %97 = math.cos %93 : vector<2x64xf32>
    %98 = arith.mulf %96, %97 : vector<2x64xf32>
    %c1 = arith.constant 1 : index
    %c0_44 = arith.constant 0 : index
    %c0_45 = arith.constant 0 : index
    %99 = vector.load %arg2[%c1, %c0_44, %c0_45] : memref<8x2x64xf32, #tpu.memory_space<vmem>>, vector<1x2x64xf32>
    %100 = vector.shape_cast %99 : vector<1x2x64xf32> to vector<2x64xf32>
    %101 = arith.mulf %100, %76 : vector<2x64xf32>
    %102 = arith.mulf %98, %101 : vector<2x64xf32>
    %103 = arith.addf %59, %102 : vector<2x64xf32>
    %cst_46 = arith.constant 3.000000e+00 : f32
    %104 = vector.broadcast %cst_46 : f32 to vector<2x64xf32>
    %105 = arith.mulf %23, %104 : vector<2x64xf32>
    %cst_47 = arith.constant 2.000000e+00 : f32
    %106 = vector.broadcast %cst_47 : f32 to vector<2x64xf32>
    %107 = arith.mulf %23, %106 : vector<2x64xf32>
    %cst_48 = arith.constant 5.000000e-01 : f32
    %108 = vector.broadcast %cst_48 : f32 to vector<2x64xf32>
    %109 = arith.mulf %108, %107 : vector<2x64xf32>
    %cst_49 = arith.constant 5.000000e-01 : f32
    %110 = vector.broadcast %cst_49 : f32 to vector<2x64xf32>
    %111 = arith.mulf %110, %105 : vector<2x64xf32>
    %112 = arith.addf %109, %111 : vector<2x64xf32>
    %cst_50 = arith.constant 3.000000e+00 : f32
    %113 = vector.broadcast %cst_50 : f32 to vector<2x64xf32>
    %114 = arith.mulf %17, %113 : vector<2x64xf32>
    %cst_51 = arith.constant 8.000000e+03 : f32
    %115 = vector.broadcast %cst_51 : f32 to vector<2x64xf32>
    %116 = arith.cmpf olt, %114, %115 : vector<2x64xf32>
    %117 = arith.extui %116 : vector<2x64xi1> to vector<2x64xi32>
    %118 = arith.sitofp %117 : vector<2x64xi32> to vector<2x64xf32>
    %cst_52 = arith.constant 9.99999974E-5 : f32
    %119 = vector.broadcast %cst_52 : f32 to vector<2x64xf32>
    %120 = arith.addf %118, %119 : vector<2x64xf32>
    %cst_53 = arith.constant 0.159154937 : f32
    %121 = vector.broadcast %cst_53 : f32 to vector<2x64xf32>
    %122 = arith.mulf %112, %121 : vector<2x64xf32>
    %123 = math.floor %122 : vector<2x64xf32>
    %cst_54 = arith.constant 6.28318548 : f32
    %124 = vector.broadcast %cst_54 : f32 to vector<2x64xf32>
    %125 = arith.mulf %124, %123 : vector<2x64xf32>
    %126 = arith.subf %112, %125 : vector<2x64xf32>
    %cst_55 = arith.constant 0.159154937 : f32
    %127 = vector.broadcast %cst_55 : f32 to vector<2x64xf32>
    %128 = arith.mulf %126, %127 : vector<2x64xf32>
    %cst_56 = arith.constant 0.699999988 : f32
    %129 = vector.broadcast %cst_56 : f32 to vector<2x64xf32>
    %130 = arith.cmpf olt, %128, %129 : vector<2x64xf32>
    %cst_57 = arith.constant 4.48798943 : f32
    %131 = vector.broadcast %cst_57 : f32 to vector<2x64xf32>
    %132 = arith.mulf %128, %131 : vector<2x64xf32>
    %cst_58 = arith.constant 0.699999988 : f32
    %133 = vector.broadcast %cst_58 : f32 to vector<2x64xf32>
    %134 = arith.subf %128, %133 : vector<2x64xf32>
    %cst_59 = arith.constant 10.4719753 : f32
    %135 = vector.broadcast %cst_59 : f32 to vector<2x64xf32>
    %136 = arith.mulf %134, %135 : vector<2x64xf32>
    %137 = arith.select %130, %132, %136 : vector<2x64xi1>, vector<2x64xf32>
    %cst_60 = arith.constant -5.000000e-01 : f32
    %cst_61 = arith.constant 5.000000e-01 : f32
    %138 = vector.broadcast %cst_60 : f32 to vector<2x64xf32>
    %139 = vector.broadcast %cst_61 : f32 to vector<2x64xf32>
    %140 = arith.select %130, %138, %139 : vector<2x64xi1>, vector<2x64xf32>
    %141 = math.cos %137 : vector<2x64xf32>
    %142 = arith.mulf %140, %141 : vector<2x64xf32>
    %c2 = arith.constant 2 : index
    %c0_62 = arith.constant 0 : index
    %c0_63 = arith.constant 0 : index
    %143 = vector.load %arg2[%c2, %c0_62, %c0_63] : memref<8x2x64xf32, #tpu.memory_space<vmem>>, vector<1x2x64xf32>
    %144 = vector.shape_cast %143 : vector<1x2x64xf32> to vector<2x64xf32>
    %145 = arith.mulf %144, %120 : vector<2x64xf32>
    %146 = arith.mulf %142, %145 : vector<2x64xf32>
    %147 = arith.addf %103, %146 : vector<2x64xf32>
    %cst_64 = arith.constant 4.000000e+00 : f32
    %148 = vector.broadcast %cst_64 : f32 to vector<2x64xf32>
    %149 = arith.mulf %23, %148 : vector<2x64xf32>
    %cst_65 = arith.constant 3.000000e+00 : f32
    %150 = vector.broadcast %cst_65 : f32 to vector<2x64xf32>
    %151 = arith.mulf %23, %150 : vector<2x64xf32>
    %cst_66 = arith.constant 5.000000e-01 : f32
    %152 = vector.broadcast %cst_66 : f32 to vector<2x64xf32>
    %153 = arith.mulf %152, %151 : vector<2x64xf32>
    %cst_67 = arith.constant 5.000000e-01 : f32
    %154 = vector.broadcast %cst_67 : f32 to vector<2x64xf32>
    %155 = arith.mulf %154, %149 : vector<2x64xf32>
    %156 = arith.addf %153, %155 : vector<2x64xf32>
    %cst_68 = arith.constant 4.000000e+00 : f32
    %157 = vector.broadcast %cst_68 : f32 to vector<2x64xf32>
    %158 = arith.mulf %17, %157 : vector<2x64xf32>
    %cst_69 = arith.constant 8.000000e+03 : f32
    %159 = vector.broadcast %cst_69 : f32 to vector<2x64xf32>
    %160 = arith.cmpf olt, %158, %159 : vector<2x64xf32>
    %161 = arith.extui %160 : vector<2x64xi1> to vector<2x64xi32>
    %162 = arith.sitofp %161 : vector<2x64xi32> to vector<2x64xf32>
    %cst_70 = arith.constant 9.99999974E-5 : f32
    %163 = vector.broadcast %cst_70 : f32 to vector<2x64xf32>
    %164 = arith.addf %162, %163 : vector<2x64xf32>
    %cst_71 = arith.constant 0.159154937 : f32
    %165 = vector.broadcast %cst_71 : f32 to vector<2x64xf32>
    %166 = arith.mulf %156, %165 : vector<2x64xf32>
    %167 = math.floor %166 : vector<2x64xf32>
    %cst_72 = arith.constant 6.28318548 : f32
    %168 = vector.broadcast %cst_72 : f32 to vector<2x64xf32>
    %169 = arith.mulf %168, %167 : vector<2x64xf32>
    %170 = arith.subf %156, %169 : vector<2x64xf32>
    %cst_73 = arith.constant 0.159154937 : f32
    %171 = vector.broadcast %cst_73 : f32 to vector<2x64xf32>
    %172 = arith.mulf %170, %171 : vector<2x64xf32>
    %cst_74 = arith.constant 0.699999988 : f32
    %173 = vector.broadcast %cst_74 : f32 to vector<2x64xf32>
    %174 = arith.cmpf olt, %172, %173 : vector<2x64xf32>
    %cst_75 = arith.constant 4.48798943 : f32
    %175 = vector.broadcast %cst_75 : f32 to vector<2x64xf32>
    %176 = arith.mulf %172, %175 : vector<2x64xf32>
    %cst_76 = arith.constant 0.699999988 : f32
    %177 = vector.broadcast %cst_76 : f32 to vector<2x64xf32>
    %178 = arith.subf %172, %177 : vector<2x64xf32>
    %cst_77 = arith.constant 10.4719753 : f32
    %179 = vector.broadcast %cst_77 : f32 to vector<2x64xf32>
    %180 = arith.mulf %178, %179 : vector<2x64xf32>
    %181 = arith.select %174, %176, %180 : vector<2x64xi1>, vector<2x64xf32>
    %cst_78 = arith.constant -5.000000e-01 : f32
    %cst_79 = arith.constant 5.000000e-01 : f32
    %182 = vector.broadcast %cst_78 : f32 to vector<2x64xf32>
    %183 = vector.broadcast %cst_79 : f32 to vector<2x64xf32>
    %184 = arith.select %174, %182, %183 : vector<2x64xi1>, vector<2x64xf32>
    %185 = math.cos %181 : vector<2x64xf32>
    %186 = arith.mulf %184, %185 : vector<2x64xf32>
    %c3 = arith.constant 3 : index
    %c0_80 = arith.constant 0 : index
    %c0_81 = arith.constant 0 : index
    %187 = vector.load %arg2[%c3, %c0_80, %c0_81] : memref<8x2x64xf32, #tpu.memory_space<vmem>>, vector<1x2x64xf32>
    %188 = vector.shape_cast %187 : vector<1x2x64xf32> to vector<2x64xf32>
    %189 = arith.mulf %188, %164 : vector<2x64xf32>
    %190 = arith.mulf %186, %189 : vector<2x64xf32>
    %191 = arith.addf %147, %190 : vector<2x64xf32>
    %cst_82 = arith.constant 5.000000e+00 : f32
    %192 = vector.broadcast %cst_82 : f32 to vector<2x64xf32>
    %193 = arith.mulf %23, %192 : vector<2x64xf32>
    %cst_83 = arith.constant 4.000000e+00 : f32
    %194 = vector.broadcast %cst_83 : f32 to vector<2x64xf32>
    %195 = arith.mulf %23, %194 : vector<2x64xf32>
    %cst_84 = arith.constant 5.000000e-01 : f32
    %196 = vector.broadcast %cst_84 : f32 to vector<2x64xf32>
    %197 = arith.mulf %196, %195 : vector<2x64xf32>
    %cst_85 = arith.constant 5.000000e-01 : f32
    %198 = vector.broadcast %cst_85 : f32 to vector<2x64xf32>
    %199 = arith.mulf %198, %193 : vector<2x64xf32>
    %200 = arith.addf %197, %199 : vector<2x64xf32>
    %cst_86 = arith.constant 5.000000e+00 : f32
    %201 = vector.broadcast %cst_86 : f32 to vector<2x64xf32>
    %202 = arith.mulf %17, %201 : vector<2x64xf32>
    %cst_87 = arith.constant 8.000000e+03 : f32
    %203 = vector.broadcast %cst_87 : f32 to vector<2x64xf32>
    %204 = arith.cmpf olt, %202, %203 : vector<2x64xf32>
    %205 = arith.extui %204 : vector<2x64xi1> to vector<2x64xi32>
    %206 = arith.sitofp %205 : vector<2x64xi32> to vector<2x64xf32>
    %cst_88 = arith.constant 9.99999974E-5 : f32
    %207 = vector.broadcast %cst_88 : f32 to vector<2x64xf32>
    %208 = arith.addf %206, %207 : vector<2x64xf32>
    %cst_89 = arith.constant 0.159154937 : f32
    %209 = vector.broadcast %cst_89 : f32 to vector<2x64xf32>
    %210 = arith.mulf %200, %209 : vector<2x64xf32>
    %211 = math.floor %210 : vector<2x64xf32>
    %cst_90 = arith.constant 6.28318548 : f32
    %212 = vector.broadcast %cst_90 : f32 to vector<2x64xf32>
    %213 = arith.mulf %212, %211 : vector<2x64xf32>
    %214 = arith.subf %200, %213 : vector<2x64xf32>
    %cst_91 = arith.constant 0.159154937 : f32
    %215 = vector.broadcast %cst_91 : f32 to vector<2x64xf32>
    %216 = arith.mulf %214, %215 : vector<2x64xf32>
    %cst_92 = arith.constant 0.699999988 : f32
    %217 = vector.broadcast %cst_92 : f32 to vector<2x64xf32>
    %218 = arith.cmpf olt, %216, %217 : vector<2x64xf32>
    %cst_93 = arith.constant 4.48798943 : f32
    %219 = vector.broadcast %cst_93 : f32 to vector<2x64xf32>
    %220 = arith.mulf %216, %219 : vector<2x64xf32>
    %cst_94 = arith.constant 0.699999988 : f32
    %221 = vector.broadcast %cst_94 : f32 to vector<2x64xf32>
    %222 = arith.subf %216, %221 : vector<2x64xf32>
    %cst_95 = arith.constant 10.4719753 : f32
    %223 = vector.broadcast %cst_95 : f32 to vector<2x64xf32>
    %224 = arith.mulf %222, %223 : vector<2x64xf32>
    %225 = arith.select %218, %220, %224 : vector<2x64xi1>, vector<2x64xf32>
    %cst_96 = arith.constant -5.000000e-01 : f32
    %cst_97 = arith.constant 5.000000e-01 : f32
    %226 = vector.broadcast %cst_96 : f32 to vector<2x64xf32>
    %227 = vector.broadcast %cst_97 : f32 to vector<2x64xf32>
    %228 = arith.select %218, %226, %227 : vector<2x64xi1>, vector<2x64xf32>
    %229 = math.cos %225 : vector<2x64xf32>
    %230 = arith.mulf %228, %229 : vector<2x64xf32>
    %c4 = arith.constant 4 : index
    %c0_98 = arith.constant 0 : index
    %c0_99 = arith.constant 0 : index
    %231 = vector.load %arg2[%c4, %c0_98, %c0_99] : memref<8x2x64xf32, #tpu.memory_space<vmem>>, vector<1x2x64xf32>
    %232 = vector.shape_cast %231 : vector<1x2x64xf32> to vector<2x64xf32>
    %233 = arith.mulf %232, %208 : vector<2x64xf32>
    %234 = arith.mulf %230, %233 : vector<2x64xf32>
    %235 = arith.addf %191, %234 : vector<2x64xf32>
    %cst_100 = arith.constant 6.000000e+00 : f32
    %236 = vector.broadcast %cst_100 : f32 to vector<2x64xf32>
    %237 = arith.mulf %23, %236 : vector<2x64xf32>
    %cst_101 = arith.constant 5.000000e+00 : f32
    %238 = vector.broadcast %cst_101 : f32 to vector<2x64xf32>
    %239 = arith.mulf %23, %238 : vector<2x64xf32>
    %cst_102 = arith.constant 5.000000e-01 : f32
    %240 = vector.broadcast %cst_102 : f32 to vector<2x64xf32>
    %241 = arith.mulf %240, %239 : vector<2x64xf32>
    %cst_103 = arith.constant 5.000000e-01 : f32
    %242 = vector.broadcast %cst_103 : f32 to vector<2x64xf32>
    %243 = arith.mulf %242, %237 : vector<2x64xf32>
    %244 = arith.addf %241, %243 : vector<2x64xf32>
    %cst_104 = arith.constant 6.000000e+00 : f32
    %245 = vector.broadcast %cst_104 : f32 to vector<2x64xf32>
    %246 = arith.mulf %17, %245 : vector<2x64xf32>
    %cst_105 = arith.constant 8.000000e+03 : f32
    %247 = vector.broadcast %cst_105 : f32 to vector<2x64xf32>
    %248 = arith.cmpf olt, %246, %247 : vector<2x64xf32>
    %249 = arith.extui %248 : vector<2x64xi1> to vector<2x64xi32>
    %250 = arith.sitofp %249 : vector<2x64xi32> to vector<2x64xf32>
    %cst_106 = arith.constant 9.99999974E-5 : f32
    %251 = vector.broadcast %cst_106 : f32 to vector<2x64xf32>
    %252 = arith.addf %250, %251 : vector<2x64xf32>
    %cst_107 = arith.constant 0.159154937 : f32
    %253 = vector.broadcast %cst_107 : f32 to vector<2x64xf32>
    %254 = arith.mulf %244, %253 : vector<2x64xf32>
    %255 = math.floor %254 : vector<2x64xf32>
    %cst_108 = arith.constant 6.28318548 : f32
    %256 = vector.broadcast %cst_108 : f32 to vector<2x64xf32>
    %257 = arith.mulf %256, %255 : vector<2x64xf32>
    %258 = arith.subf %244, %257 : vector<2x64xf32>
    %cst_109 = arith.constant 0.159154937 : f32
    %259 = vector.broadcast %cst_109 : f32 to vector<2x64xf32>
    %260 = arith.mulf %258, %259 : vector<2x64xf32>
    %cst_110 = arith.constant 0.699999988 : f32
    %261 = vector.broadcast %cst_110 : f32 to vector<2x64xf32>
    %262 = arith.cmpf olt, %260, %261 : vector<2x64xf32>
    %cst_111 = arith.constant 4.48798943 : f32
    %263 = vector.broadcast %cst_111 : f32 to vector<2x64xf32>
    %264 = arith.mulf %260, %263 : vector<2x64xf32>
    %cst_112 = arith.constant 0.699999988 : f32
    %265 = vector.broadcast %cst_112 : f32 to vector<2x64xf32>
    %266 = arith.subf %260, %265 : vector<2x64xf32>
    %cst_113 = arith.constant 10.4719753 : f32
    %267 = vector.broadcast %cst_113 : f32 to vector<2x64xf32>
    %268 = arith.mulf %266, %267 : vector<2x64xf32>
    %269 = arith.select %262, %264, %268 : vector<2x64xi1>, vector<2x64xf32>
    %cst_114 = arith.constant -5.000000e-01 : f32
    %cst_115 = arith.constant 5.000000e-01 : f32
    %270 = vector.broadcast %cst_114 : f32 to vector<2x64xf32>
    %271 = vector.broadcast %cst_115 : f32 to vector<2x64xf32>
    %272 = arith.select %262, %270, %271 : vector<2x64xi1>, vector<2x64xf32>
    %273 = math.cos %269 : vector<2x64xf32>
    %274 = arith.mulf %272, %273 : vector<2x64xf32>
    %c5 = arith.constant 5 : index
    %c0_116 = arith.constant 0 : index
    %c0_117 = arith.constant 0 : index
    %275 = vector.load %arg2[%c5, %c0_116, %c0_117] : memref<8x2x64xf32, #tpu.memory_space<vmem>>, vector<1x2x64xf32>
    %276 = vector.shape_cast %275 : vector<1x2x64xf32> to vector<2x64xf32>
    %277 = arith.mulf %276, %252 : vector<2x64xf32>
    %278 = arith.mulf %274, %277 : vector<2x64xf32>
    %279 = arith.addf %235, %278 : vector<2x64xf32>
    %cst_118 = arith.constant 7.000000e+00 : f32
    %280 = vector.broadcast %cst_118 : f32 to vector<2x64xf32>
    %281 = arith.mulf %23, %280 : vector<2x64xf32>
    %cst_119 = arith.constant 6.000000e+00 : f32
    %282 = vector.broadcast %cst_119 : f32 to vector<2x64xf32>
    %283 = arith.mulf %23, %282 : vector<2x64xf32>
    %cst_120 = arith.constant 5.000000e-01 : f32
    %284 = vector.broadcast %cst_120 : f32 to vector<2x64xf32>
    %285 = arith.mulf %284, %283 : vector<2x64xf32>
    %cst_121 = arith.constant 5.000000e-01 : f32
    %286 = vector.broadcast %cst_121 : f32 to vector<2x64xf32>
    %287 = arith.mulf %286, %281 : vector<2x64xf32>
    %288 = arith.addf %285, %287 : vector<2x64xf32>
    %cst_122 = arith.constant 7.000000e+00 : f32
    %289 = vector.broadcast %cst_122 : f32 to vector<2x64xf32>
    %290 = arith.mulf %17, %289 : vector<2x64xf32>
    %cst_123 = arith.constant 8.000000e+03 : f32
    %291 = vector.broadcast %cst_123 : f32 to vector<2x64xf32>
    %292 = arith.cmpf olt, %290, %291 : vector<2x64xf32>
    %293 = arith.extui %292 : vector<2x64xi1> to vector<2x64xi32>
    %294 = arith.sitofp %293 : vector<2x64xi32> to vector<2x64xf32>
    %cst_124 = arith.constant 9.99999974E-5 : f32
    %295 = vector.broadcast %cst_124 : f32 to vector<2x64xf32>
    %296 = arith.addf %294, %295 : vector<2x64xf32>
    %cst_125 = arith.constant 0.159154937 : f32
    %297 = vector.broadcast %cst_125 : f32 to vector<2x64xf32>
    %298 = arith.mulf %288, %297 : vector<2x64xf32>
    %299 = math.floor %298 : vector<2x64xf32>
    %cst_126 = arith.constant 6.28318548 : f32
    %300 = vector.broadcast %cst_126 : f32 to vector<2x64xf32>
    %301 = arith.mulf %300, %299 : vector<2x64xf32>
    %302 = arith.subf %288, %301 : vector<2x64xf32>
    %cst_127 = arith.constant 0.159154937 : f32
    %303 = vector.broadcast %cst_127 : f32 to vector<2x64xf32>
    %304 = arith.mulf %302, %303 : vector<2x64xf32>
    %cst_128 = arith.constant 0.699999988 : f32
    %305 = vector.broadcast %cst_128 : f32 to vector<2x64xf32>
    %306 = arith.cmpf olt, %304, %305 : vector<2x64xf32>
    %cst_129 = arith.constant 4.48798943 : f32
    %307 = vector.broadcast %cst_129 : f32 to vector<2x64xf32>
    %308 = arith.mulf %304, %307 : vector<2x64xf32>
    %cst_130 = arith.constant 0.699999988 : f32
    %309 = vector.broadcast %cst_130 : f32 to vector<2x64xf32>
    %310 = arith.subf %304, %309 : vector<2x64xf32>
    %cst_131 = arith.constant 10.4719753 : f32
    %311 = vector.broadcast %cst_131 : f32 to vector<2x64xf32>
    %312 = arith.mulf %310, %311 : vector<2x64xf32>
    %313 = arith.select %306, %308, %312 : vector<2x64xi1>, vector<2x64xf32>
    %cst_132 = arith.constant -5.000000e-01 : f32
    %cst_133 = arith.constant 5.000000e-01 : f32
    %314 = vector.broadcast %cst_132 : f32 to vector<2x64xf32>
    %315 = vector.broadcast %cst_133 : f32 to vector<2x64xf32>
    %316 = arith.select %306, %314, %315 : vector<2x64xi1>, vector<2x64xf32>
    %317 = math.cos %313 : vector<2x64xf32>
    %318 = arith.mulf %316, %317 : vector<2x64xf32>
    %c6 = arith.constant 6 : index
    %c0_134 = arith.constant 0 : index
    %c0_135 = arith.constant 0 : index
    %319 = vector.load %arg2[%c6, %c0_134, %c0_135] : memref<8x2x64xf32, #tpu.memory_space<vmem>>, vector<1x2x64xf32>
    %320 = vector.shape_cast %319 : vector<1x2x64xf32> to vector<2x64xf32>
    %321 = arith.mulf %320, %296 : vector<2x64xf32>
    %322 = arith.mulf %318, %321 : vector<2x64xf32>
    %323 = arith.addf %279, %322 : vector<2x64xf32>
    %cst_136 = arith.constant 8.000000e+00 : f32
    %324 = vector.broadcast %cst_136 : f32 to vector<2x64xf32>
    %325 = arith.mulf %23, %324 : vector<2x64xf32>
    %cst_137 = arith.constant 7.000000e+00 : f32
    %326 = vector.broadcast %cst_137 : f32 to vector<2x64xf32>
    %327 = arith.mulf %23, %326 : vector<2x64xf32>
    %cst_138 = arith.constant 5.000000e-01 : f32
    %328 = vector.broadcast %cst_138 : f32 to vector<2x64xf32>
    %329 = arith.mulf %328, %327 : vector<2x64xf32>
    %cst_139 = arith.constant 5.000000e-01 : f32
    %330 = vector.broadcast %cst_139 : f32 to vector<2x64xf32>
    %331 = arith.mulf %330, %325 : vector<2x64xf32>
    %332 = arith.addf %329, %331 : vector<2x64xf32>
    %cst_140 = arith.constant 8.000000e+00 : f32
    %333 = vector.broadcast %cst_140 : f32 to vector<2x64xf32>
    %334 = arith.mulf %17, %333 : vector<2x64xf32>
    %cst_141 = arith.constant 8.000000e+03 : f32
    %335 = vector.broadcast %cst_141 : f32 to vector<2x64xf32>
    %336 = arith.cmpf olt, %334, %335 : vector<2x64xf32>
    %337 = arith.extui %336 : vector<2x64xi1> to vector<2x64xi32>
    %338 = arith.sitofp %337 : vector<2x64xi32> to vector<2x64xf32>
    %cst_142 = arith.constant 9.99999974E-5 : f32
    %339 = vector.broadcast %cst_142 : f32 to vector<2x64xf32>
    %340 = arith.addf %338, %339 : vector<2x64xf32>
    %cst_143 = arith.constant 0.159154937 : f32
    %341 = vector.broadcast %cst_143 : f32 to vector<2x64xf32>
    %342 = arith.mulf %332, %341 : vector<2x64xf32>
    %343 = math.floor %342 : vector<2x64xf32>
    %cst_144 = arith.constant 6.28318548 : f32
    %344 = vector.broadcast %cst_144 : f32 to vector<2x64xf32>
    %345 = arith.mulf %344, %343 : vector<2x64xf32>
    %346 = arith.subf %332, %345 : vector<2x64xf32>
    %cst_145 = arith.constant 0.159154937 : f32
    %347 = vector.broadcast %cst_145 : f32 to vector<2x64xf32>
    %348 = arith.mulf %346, %347 : vector<2x64xf32>
    %cst_146 = arith.constant 0.699999988 : f32
    %349 = vector.broadcast %cst_146 : f32 to vector<2x64xf32>
    %350 = arith.cmpf olt, %348, %349 : vector<2x64xf32>
    %cst_147 = arith.constant 4.48798943 : f32
    %351 = vector.broadcast %cst_147 : f32 to vector<2x64xf32>
    %352 = arith.mulf %348, %351 : vector<2x64xf32>
    %cst_148 = arith.constant 0.699999988 : f32
    %353 = vector.broadcast %cst_148 : f32 to vector<2x64xf32>
    %354 = arith.subf %348, %353 : vector<2x64xf32>
    %cst_149 = arith.constant 10.4719753 : f32
    %355 = vector.broadcast %cst_149 : f32 to vector<2x64xf32>
    %356 = arith.mulf %354, %355 : vector<2x64xf32>
    %357 = arith.select %350, %352, %356 : vector<2x64xi1>, vector<2x64xf32>
    %cst_150 = arith.constant -5.000000e-01 : f32
    %cst_151 = arith.constant 5.000000e-01 : f32
    %358 = vector.broadcast %cst_150 : f32 to vector<2x64xf32>
    %359 = vector.broadcast %cst_151 : f32 to vector<2x64xf32>
    %360 = arith.select %350, %358, %359 : vector<2x64xi1>, vector<2x64xf32>
    %361 = math.cos %357 : vector<2x64xf32>
    %362 = arith.mulf %360, %361 : vector<2x64xf32>
    %c7 = arith.constant 7 : index
    %c0_152 = arith.constant 0 : index
    %c0_153 = arith.constant 0 : index
    %363 = vector.load %arg2[%c7, %c0_152, %c0_153] : memref<8x2x64xf32, #tpu.memory_space<vmem>>, vector<1x2x64xf32>
    %364 = vector.shape_cast %363 : vector<1x2x64xf32> to vector<2x64xf32>
    %365 = arith.mulf %364, %340 : vector<2x64xf32>
    %366 = arith.mulf %362, %365 : vector<2x64xf32>
    %367 = arith.addf %323, %366 : vector<2x64xf32>
    %c0_154 = arith.constant 0 : index
    %c0_155 = arith.constant 0 : index
    %368 = vector.load %arg6[%c0_154, %c0_155] : memref<64x64xf32, #tpu.memory_space<vmem>>, vector<64x64xf32>
    %cst_156 = arith.constant dense<0.000000e+00> : vector<2x64xf32>
    %369 = tpu.matmul %367, %368, %cst_156 {dimension_numbers = #tpu.dot_dimension_numbers<[1], [0], [0], [1], [0, 0, 1, 1], [], []>} : vector<2x64xf32>, vector<64x64xf32>, vector<2x64xf32> -> vector<2x64xf32>
    %c0_157 = arith.constant 0 : index
    %c0_158 = arith.constant 0 : index
    %370 = vector.load %arg7[%c0_157, %c0_158] : memref<64x64xf32, #tpu.memory_space<vmem>>, vector<64x64xf32>
    %cst_159 = arith.constant dense<0.000000e+00> : vector<2x64xf32>
    %371 = tpu.matmul %1, %370, %cst_159 {dimension_numbers = #tpu.dot_dimension_numbers<[1], [0], [0], [1], [0, 0, 1, 1], [], []>} : vector<2x64xf32>, vector<64x64xf32>, vector<2x64xf32> -> vector<2x64xf32>
    %cst_160 = arith.constant dense<0.000000e+00> : vector<2xf32>
    %372 = vector.multi_reduction <add>, %371, %cst_160 [1] : vector<2x64xf32> to vector<2xf32>
    %373 = vector.shape_cast %372 : vector<2xf32> to vector<2x1xf32>
    %cst_161 = arith.constant 6.400000e+01 : f32
    %374 = vector.broadcast %cst_161 : f32 to vector<2x1xf32>
    %375 = arith.divf %373, %374 : vector<2x1xf32>
    %376 = vector.broadcast %375 : vector<2x1xf32> to vector<2x64xf32>
    %377 = arith.subf %371, %376 : vector<2x64xf32>
    %378 = arith.mulf %377, %377 : vector<2x64xf32>
    %cst_162 = arith.constant dense<0.000000e+00> : vector<2xf32>
    %379 = vector.multi_reduction <add>, %378, %cst_162 [1] : vector<2x64xf32> to vector<2xf32>
    %380 = vector.shape_cast %379 : vector<2xf32> to vector<2x1xf32>
    %cst_163 = arith.constant 0.0158730168 : f32
    %381 = vector.broadcast %cst_163 : f32 to vector<2x1xf32>
    %382 = arith.mulf %380, %381 : vector<2x1xf32>
    %383 = vector.broadcast %375 : vector<2x1xf32> to vector<2x64xf32>
    %384 = arith.subf %371, %383 : vector<2x64xf32>
    %385 = math.sqrt %382 : vector<2x1xf32>
    %cst_164 = arith.constant 9.99999993E-9 : f32
    %386 = vector.broadcast %cst_164 : f32 to vector<2x1xf32>
    %387 = arith.addf %385, %386 : vector<2x1xf32>
    %388 = vector.broadcast %387 : vector<2x1xf32> to vector<2x64xf32>
    %389 = arith.divf %384, %388 : vector<2x64xf32>
    %cst_165 = arith.constant 1.000000e-01 : f32
    %390 = vector.broadcast %cst_165 : f32 to vector<2x64xf32>
    %391 = arith.mulf %389, %390 : vector<2x64xf32>
    %cst_166 = arith.constant 0.000000e+00 : f32
    %392 = vector.broadcast %cst_166 : f32 to vector<2x64xf32>
    %393 = arith.cmpf ogt, %0, %392 : vector<2x64xf32>
    %394 = arith.extui %393 : vector<2x64xi1> to vector<2x64xi32>
    %395 = arith.sitofp %394 : vector<2x64xi32> to vector<2x64xf32>
    %396 = arith.mulf %369, %395 : vector<2x64xf32>
    %397 = arith.addf %396, %391 : vector<2x64xf32>
    %c0_167 = arith.constant 0 : index
    %c0_168 = arith.constant 0 : index
    %398 = vector.load %arg8[%c0_167, %c0_168] : memref<2x64xf32, #tpu.memory_space<vmem>>, vector<2x64xf32>
    tpu.vector_store %arg8[%c0_167, %c0_168], %397 {strides = array<i32>} : memref<2x64xf32, #tpu.memory_space<vmem>>, vector<2x64xf32>,
    %399 = vector.extract_strided_slice %23 {offsets = [0, 63], sizes = [2, 1], strides = [1, 1]} : vector<2x64xf32> to vector<2x1xf32>
    %cst_169 = arith.constant 0.159154937 : f32
    %400 = vector.broadcast %cst_169 : f32 to vector<2x1xf32>
    %401 = arith.mulf %399, %400 : vector<2x1xf32>
    %402 = math.floor %401 : vector<2x1xf32>
    %cst_170 = arith.constant 6.28318548 : f32
    %403 = vector.broadcast %cst_170 : f32 to vector<2x1xf32>
    %404 = arith.mulf %403, %402 : vector<2x1xf32>
    %405 = arith.subf %399, %404 : vector<2x1xf32>
    %c0_171 = arith.constant 0 : index
    %c0_172 = arith.constant 0 : index
    %406 = vector.load %arg9[%c0_171, %c0_172] : memref<2x1xf32, #tpu.memory_space<vmem>>, vector<2x1xf32>
    tpu.vector_store %arg9[%c0_171, %c0_172], %405 {strides = array<i32>} : memref<2x1xf32, #tpu.memory_space<vmem>>, vector<2x1xf32>,
    return
  }
  func.func @transform_0(%arg0: i32) -> (i32, i32) {
    %c0_i32 = arith.constant 0 : i32
    %c0_i32_0 = arith.constant 0 : i32
    return %arg0, %c0_i32 : i32, i32
  }
  func.func @transform_1(%arg0: i32) -> (i32, i32, i32) {
    %c0_i32 = arith.constant 0 : i32
    %c0_i32_0 = arith.constant 0 : i32
    %c0_i32_1 = arith.constant 0 : i32
    return %c0_i32, %arg0, %c0_i32_0 : i32, i32, i32
  }
  func.func @transform_2(%arg0: i32) -> (i32, i32) {
    %c0_i32 = arith.constant 0 : i32
    %c0_i32_0 = arith.constant 0 : i32
    return %arg0, %c0_i32 : i32, i32
  }
  func.func @transform_3(%arg0: i32) -> (i32, i32) {
    %c0_i32 = arith.constant 0 : i32
    %c0_i32_0 = arith.constant 0 : i32
    return %arg0, %c0_i32 : i32, i32
  }
  func.func @transform_4(%arg0: i32) -> (i32, i32) {
    %c0_i32 = arith.constant 0 : i32
    %c0_i32_0 = arith.constant 0 : i32
    %c0_i32_1 = arith.constant 0 : i32
    return %c0_i32, %c0_i32_0 : i32, i32
  }
  func.func @transform_5(%arg0: i32) -> (i32, i32) {
    %c0_i32 = arith.constant 0 : i32
    %c0_i32_0 = arith.constant 0 : i32
    %c0_i32_1 = arith.constant 0 : i32
    return %c0_i32, %c0_i32_0 : i32, i32
  }
  func.func @transform_6(%arg0: i32) -> (i32, i32) {
    %c0_i32 = arith.constant 0 : i32
    %c0_i32_0 = arith.constant 0 : i32
    %c0_i32_1 = arith.constant 0 : i32
    return %c0_i32, %c0_i32_0 : i32, i32
  }
  func.func @transform_7(%arg0: i32) -> (i32, i32) {
    %c0_i32 = arith.constant 0 : i32
    %c0_i32_0 = arith.constant 0 : i32
    return %arg0, %c0_i32 : i32, i32
  }
  func.func @transform_8(%arg0: i32) -> (i32, i32) {
    %c0_i32 = arith.constant 0 : i32
    %c0_i32_0 = arith.constant 0 : i32
    return %arg0, %c0_i32 : i32, i32
  }
}

</mosaic_0001>

<llo_original>
// kernel: tpu_custom_call.1
$region0: #{tpu_custom_call.1}
  #allocation0 [shape = 'u32[]', space=smem, size = 0x4, offset = 0x4, fixed_abs, tag = 'smem constant byte address 0x4 - core index']
  #allocation1 [shape = 'u32[144,128]{1,0:T(1,128)}', space=vmem, size = 0x12000, scoped, tag = 'internal scratch']
  %s0 = inlined_call_operand.vmem [shape: f32[2,64], index: 0, kind: input, shape index: {}]
  %s1 = inlined_call_operand.hbm [shape: f32[8,2,64], index: 1, kind: input, shape index: {}]
  %s2 = inlined_call_operand.vmem [shape: f32[2,64], index: 2, kind: input, shape index: {}]
  %s3 = inlined_call_operand.vmem [shape: f32[2,1], index: 3, kind: input, shape index: {}]
  %s4 = inlined_call_operand.hbm [shape: f32[64,64], index: 4, kind: input, shape index: {}]
  %s5 = inlined_call_operand.hbm [shape: f32[64,64], index: 5, kind: input, shape index: {}]
  %s6 = inlined_call_operand.hbm [shape: f32[64,64], index: 6, kind: input, shape index: {}]
  %s7 = inlined_call_operand.hbm [shape: f32[2,64], index: 7, kind: output, shape index: {0}]
  %s8 = inlined_call_operand.vmem [shape: f32[2,1], index: 8, kind: output, shape index: {1}]
  %9 = xla_tuple %s7, %s8
  %s10 = sld [smem:[#allocation0]]
  $region62: #{tpu_custom_call.1} parent=0
    _
  %s12 = ssub.s32 1, %s10
  %s13 = scalar_select 0, %s12, %s10
  $region1: #{tpu_custom_call.1} parent=0
    #allocation2 [shape = 'u8[8192]{0}', space=vmem, size = 0x2000, scoped, tag = 'input window, operand 1, single buffered']
    #allocation3 [shape = 's32[1]{0}', space=sflag, size = 0x4, scoped, tag = 'scoped memory for tpu_custom_call.1']
    #allocation4 [shape = 's32[1]{0}', space=sflag, size = 0x4, scoped, tag = 'scoped memory for tpu_custom_call.1']
    #allocation5 [shape = 'u8[32768]{0}', space=vmem, size = 0x8000, scoped, tag = 'input window, operand 4, single buffered']
    #allocation6 [shape = 's32[1]{0}', space=sflag, size = 0x4, scoped, tag = 'scoped memory for tpu_custom_call.1']
    #allocation7 [shape = 'u8[32768]{0}', space=vmem, size = 0x8000, scoped, tag = 'input window, operand 5, single buffered']
    #allocation8 [shape = 'u8[32768]{0}', space=vmem, size = 0x8000, scoped, tag = 'input window, operand 6, single buffered']
    #allocation9 [shape = 's32[1]{0}', space=sflag, size = 0x4, scoped, tag = 'scoped memory for tpu_custom_call.1']
    #allocation10 [shape = 'u8[1024]{0}', space=vmem, size = 0x400, scoped, tag = 'output window, operand 0, single buffered']
    %14 = vsyncpa [#allocation3], 0
    %15 = vsyncpa [#allocation6], 0
    %16 = vsyncpa [#allocation9], 0
    %17 = vsyncpa [#allocation4], 0
    // Predicated region
    $region2: #{tpu_custom_call.1} parent=1 // pred_check
      _
    $region3: #{tpu_custom_call.1} parent=1 // pred_check_branch
      %19 = sbr.rel (0) target = $region5
    $region4: #{tpu_custom_call.1} parent=1 // pred_region
      _
    $region5: #{tpu_custom_call.1} parent=1 // pred_fallthru
      _
    // Predicated region
    $region6: #{tpu_custom_call.1} parent=1 // pred_check
      _
    $region7: #{tpu_custom_call.1} parent=1 // pred_check_branch
      %21 = sbr.rel (0) target = $region9
    $region8: #{tpu_custom_call.1} parent=1 // pred_region
      %s23 = ssub.s32 256, 256
      %24 = vsyncadd [#allocation3], %s23
      %s25 = sshll.u32 [#allocation2], 4
      %s26 = int_to_ptr.vmem [resolvable:$true] %s25
      %31 = dma.hbm_to_vmem [thread:$0]  %s1, 256, %s26, [#allocation3], 32, 32, 2
    $region9: #{tpu_custom_call.1} parent=1 // pred_fallthru
      _
    // Predicated region
    $region10: #{tpu_custom_call.1} parent=1 // pred_check
      _
    $region11: #{tpu_custom_call.1} parent=1 // pred_check_branch
      %33 = sbr.rel (0) target = $region13
    $region12: #{tpu_custom_call.1} parent=1 // pred_region
      _
    $region13: #{tpu_custom_call.1} parent=1 // pred_fallthru
      _
    // Predicated region
    $region14: #{tpu_custom_call.1} parent=1 // pred_check
      _
    $region15: #{tpu_custom_call.1} parent=1 // pred_check_branch
      %35 = sbr.rel (0) target = $region17
    $region16: #{tpu_custom_call.1} parent=1 // pred_region
      _
    $region17: #{tpu_custom_call.1} parent=1 // pred_fallthru
      _
    // Predicated region
    $region18: #{tpu_custom_call.1} parent=1 // pred_check
      _
    $region19: #{tpu_custom_call.1} parent=1 // pred_check_branch
      %37 = sbr.rel (0) target = $region21
    $region20: #{tpu_custom_call.1} parent=1 // pred_region
      %s39 = ssub.s32 1024, 1024
      %40 = vsyncadd [#allocation6], %s39
      %s41 = sshll.u32 [#allocation5], 4
      %s42 = int_to_ptr.vmem [resolvable:$true] %s41
      %47 = dma.hbm_to_vmem [thread:$0]  %s4, 1024, %s42, [#allocation6], 128, 128, 8
    $region21: #{tpu_custom_call.1} parent=1 // pred_fallthru
      _
    // Predicated region
    $region22: #{tpu_custom_call.1} parent=1 // pred_check
      _
    $region23: #{tpu_custom_call.1} parent=1 // pred_check_branch
      %49 = sbr.rel (0) target = $region25
    $region24: #{tpu_custom_call.1} parent=1 // pred_region
      %s51 = ssub.s32 1024, 1024
      %52 = vsyncadd [#allocation6], %s51
      %s53 = sshll.u32 [#allocation7], 4
      %s54 = int_to_ptr.vmem [resolvable:$true] %s53
      %59 = dma.hbm_to_vmem [thread:$0]  %s5, 1024, %s54, [#allocation6], 128, 128, 8
    $region25: #{tpu_custom_call.1} parent=1 // pred_fallthru
      _
    // Predicated region
    $region26: #{tpu_custom_call.1} parent=1 // pred_check
      _
    $region27: #{tpu_custom_call.1} parent=1 // pred_check_branch
      %61 = sbr.rel (0) target = $region29
    $region28: #{tpu_custom_call.1} parent=1 // pred_region
      %s63 = ssub.s32 1024, 1024
      %64 = vsyncadd [#allocation9], %s63
      %s65 = sshll.u32 [#allocation8], 4
      %s66 = int_to_ptr.vmem [resolvable:$true] %s65
      %71 = dma.hbm_to_vmem [thread:$0]  %s6, 1024, %s66, [#allocation9], 128, 128, 8
    $region29: #{tpu_custom_call.1} parent=1 // pred_fallthru
      _
    // Predicated region
    $region30: #{tpu_custom_call.1} parent=1 // pred_check
      _
    $region31: #{tpu_custom_call.1} parent=1 // pred_check_branch
      %73 = sbr.rel (0) target = $region33
    $region32: #{tpu_custom_call.1} parent=1 // pred_region
      %74 = dma.done [#allocation3], 256
    $region33: #{tpu_custom_call.1} parent=1 // pred_fallthru
      _
    // Predicated region
    $region34: #{tpu_custom_call.1} parent=1 // pred_check
      _
    $region35: #{tpu_custom_call.1} parent=1 // pred_check_branch
      %76 = sbr.rel (0) target = $region37
    $region36: #{tpu_custom_call.1} parent=1 // pred_region
      %77 = dma.done [#allocation6], 1024
    $region37: #{tpu_custom_call.1} parent=1 // pred_fallthru
      _
    // Predicated region
    $region38: #{tpu_custom_call.1} parent=1 // pred_check
      _
    $region39: #{tpu_custom_call.1} parent=1 // pred_check_branch
      %79 = sbr.rel (0) target = $region41
    $region40: #{tpu_custom_call.1} parent=1 // pred_region
      %80 = dma.done [#allocation6], 1024
    $region41: #{tpu_custom_call.1} parent=1 // pred_fallthru
      _
    // Predicated region
    $region42: #{tpu_custom_call.1} parent=1 // pred_check
      _
    $region43: #{tpu_custom_call.1} parent=1 // pred_check_branch
      %82 = sbr.rel (0) target = $region45
    $region44: #{tpu_custom_call.1} parent=1 // pred_region
      %83 = dma.done [#allocation9], 1024
    $region45: #{tpu_custom_call.1} parent=1 // pred_fallthru
      _
    %v84 = vld [vmem:[%s0] sm:$0x3]
    %v85 = vld [vmem:[%s2] sm:$0x3]
    %v86 = vld [vmem:[%s3] sm:$0x3]
    %v87 = vlaneseq
    %v88 = vand.u32 %v87, 127
    %v89 = vcvt.s32.f32 %v88
    %v90 = vmul.f32 %v89, 6.25e-05
    %v91 = vmul.f32 %v90, 34.557518
    %v92 = vand.u32 2147483647, %v91
    %vm93 = vcmp.le.f32.partialorder %v92, 0.7853982
    %vm94 = vcmp.lt.s32.totalorder %v91, 0
    %v95 = vand.u32 %v91, 2139095040
    %v96 = vshrl.u32 %v95, 23
    %v97 = vsub.s32 %v96, 127
    %v98 = vand.u32 2147483647, %v91
    %v99 = vand.u32 %v98, 8388607
    %v100 = vor.u32 %v99, 8388608
    %v101 = vsub.s32 0, %v100
    %v102 = vadd.s32 %v97, 1
    %vm103 = vcmp.gt.s32.totalorder %v102, 0
    %v104 = vsel %vm103, %v102, 0
    %v105 = vshrl.u32 %v104, 5
    %v106 = vand.u32 %v104, 31
    %v107 = vsub.s32 32, %v106
    %v108 = vshrl.u32 683565275, %v107
    %v109 = vshll.u32 683565275, %v106
    %v110 = vshrl.u32 2475754826, %v107
    %v111 = vor.u32 %v109, %v110
    %v112 = vshll.u32 2475754826, %v106
    %v113 = vshrl.u32 2131351028, %v107
    %v114 = vor.u32 %v112, %v113
    %v115 = vshll.u32 2131351028, %v106
    %v116 = vshrl.u32 2102212464, %v107
    %v117 = vor.u32 %v115, %v116
    %v118 = vshll.u32 2102212464, %v106
    %v119 = vshrl.u32 920167782, %v107
    %v120 = vor.u32 %v118, %v119
    %v121 = vshll.u32 920167782, %v106
    %v122 = vshrl.u32 1326507024, %v107
    %v123 = vor.u32 %v121, %v122
    %vm124 = vcmp.lt.s32.totalorder %v105, 1
    %vm125 = vcmp.lt.s32.totalorder %v105, 2
    %vm126 = vcmp.lt.s32.totalorder %v105, 3
    %vm127 = vcmp.lt.s32.totalorder %v105, 4
    %v128 = vsel %vm124, %v108, %v111
    %v129 = vsel %vm127, %v117, 2102212464
    %v130 = vsel %vm126, %v114, %v129
    %v131 = vsel %vm125, %v128, %v130
    %v132 = vsel %vm124, %v111, %v114
    %v133 = vsel %vm127, %v120, 920167782
    %v134 = vsel %vm126, %v117, %v133
    %v135 = vsel %vm125, %v132, %v134
    %v136 = vsel %vm124, %v114, %v117
    %v137 = vsel %vm127, %v123, 1326507024
    %v138 = vsel %vm126, %v120, %v137
    %v139 = vsel %vm125, %v136, %v138
    %v140 = vshll.u32 %v100, 8
    %v141 = vmul.u32.u64.compose %v140, %v139
    %v142 = vextract.low.u32 %v141
    %v143 = vextract.high.u32 %v141
    %v144 = vmul.u32.u64.compose %v140, %v135
    %v145 = vextract.low.u32 %v144
    %v146 = vextract.high.u32 %v144
    %v147 = vmul.u32 %v140, %v131
    %v148 = vadd.s32 %v143, %v145
    %vm149 = vc.u32 %v143, %v145
    %v150 = vadd.s32 %v146, 1
    %v151 = vsel %vm149, %v150, %v146
    %v152 = vadd.s32 %v147, %v151
    %v153 = vadd.s32 %v152, 536870912
    %v154 = vshrl.u32 %v153, 30
    %v155 = vshll.u32 %v154, 30
    %v156 = vsub.s32 %v152, %v155
    %vm157 = vcmp.lt.s32.totalorder %v156, 0
    %v158 = vsub.s32 0, %v156
    %v159 = vsel %vm157, %v158, %v156
    %v160 = vclz %v159
    %v161 = vsub.s32 %v160, 2
    %vm162 = vcmp.gt.s32.totalorder 0, %v161
    %v163 = vsel %vm162, 0, %v161
    %v164 = vsub.s32 32, %v163
    %v165 = vshll.u32 %v156, %v163
    %v166 = vshrl.u32 %v148, %v164
    %v167 = vor.u32 %v165, %v166
    %v168 = vsub.s32 4294967266, %v163
    %v169 = vadd.s32 %v168, 127
    %v170 = vshll.u32 %v169, 23
    %v171 = vor.u32 4788187, %v170
    %v172 = vand.u32 2147483647, %v171
    %v174 = vcvt.s32.f32 %v167
    %v175 = vmul.f32 %v174, %v172
    %v176 = vxor.u32 %v175, 2147483648
    %v177 = vsel %vm94, %v176, %v175
    %v178 = vsub.s32 4, %v154
    %v179 = vsel %vm94, %v178, %v154
    %v180 = vsel %vm93, %v91, %v177
    %v181 = vsel %vm93, 0, %v179
    %v182 = vcosq.f32.pop %v180
    %v183 = vsinq.f32.pop %v180
    %vm184 = vweird.f32 %v91
    %v185 = vadd.s32 %v181, 3
    %v186 = vand.u32 %v185, 3
    %vm187 = vcmp.lt.s32.totalorder %v186, 2
    %vm188 = vcmp.eq.s32.totalorder %v186, 0
    %v189 = vxor.u32 %v183, 2147483648
    %v190 = vsel %vm188, %v182, %v189
    %vm191 = vcmp.eq.s32.totalorder %v186, 2
    %v192 = vxor.u32 %v182, 2147483648
    %v193 = vsel %vm191, %v192, %v183
    %v194 = vsel %vm187, %v190, %v193
    %v195 = vsel %vm184, nan, %v194
    %v196 = vmul.f32 %v195, 0.0057762265
    %v197 = vmul.f32 %v196, 1.442695
    %v198 = vpow.pop %v197
    %vm199 = vcmp.gt.f32.partialorder %v84, 0.0
    %v200 = vmul.f32 %v84, %v198
    %v201 = vsel %vm199, %v200, %v84
    %v202 = vmul.f32 %v201, 0.0003926991
    %v203 = vld [vmem:[#allocation5] sm:$0xff]
    %v204 = vld [vmem:[#allocation5 + $0x8] sm:$0xff]
    %v205 = vld [vmem:[#allocation5 + $0x10] sm:$0xff]
    %v206 = vld [vmem:[#allocation5 + $0x18] sm:$0xff]
    %v207 = vld [vmem:[#allocation5 + $0x20] sm:$0xff]
    %v208 = vld [vmem:[#allocation5 + $0x28] sm:$0xff]
    %v209 = vld [vmem:[#allocation5 + $0x30] sm:$0xff]
    %v210 = vld [vmem:[#allocation5 + $0x38] sm:$0xff]
    %212 = vset.pattern.permute.xlu0 0
    %213 = vperm.xlu0 %212, %v86
    %v214 = vpop.permute.xlu0 %213
    %vm216 = vcmask 523264
    %v218 = vsel %vm216, %v202, 0
    %220 = vmatprep.subr.mxu0 0.0
    %221 = vmatpush1.msra.mxu0 %v203
    %222 = vmatprep.subr.mxu0 0.0
    %223 = vmatpush1.msra.mxu0 %v204
    %224 = vmatprep.subr.mxu0 0.0
    %225 = vmatpush1.msra.mxu0 %v205
    %226 = vmatprep.subr.mxu0 0.0
    %227 = vmatpush1.msra.mxu0 %v206
    %228 = vmatprep.subr.mxu0 0.0
    %229 = vmatpush1.msra.mxu0 %v207
    %230 = vmatprep.subr.mxu0 0.0
    %231 = vmatpush1.msra.mxu0 %v208
    %232 = vmatprep.subr.mxu0 0.0
    %233 = vmatpush1.msra.mxu0 %v209
    %234 = vmatprep.subr.mxu0 0.0
    %235 = vmatpush1.msra.mxu0 %v210
    %236 = vmatprep.subr.mxu0 0.0
    %237 = vmatpush1.msra.mxu0 0.0
    %238 = vmatprep.subr.mxu0 0.0
    %239 = vmatpush1.msra.mxu0 0.0
    %240 = vmatprep.subr.mxu0 0.0
    %241 = vmatpush1.msra.mxu0 0.0
    %242 = vmatprep.subr.mxu0 0.0
    %243 = vmatpush1.msra.mxu0 0.0
    %244 = vmatprep.subr.mxu0 0.0
    %245 = vmatpush1.msra.mxu0 0.0
    %246 = vmatprep.subr.mxu0 0.0
    %247 = vmatpush1.msra.mxu0 0.0
    %248 = vmatprep.subr.mxu0 0.0
    %249 = vmatpush1.msra.mxu0 0.0
    %250 = vmatprep.subr.mxu0 0.0
    %251 = vmatpush1.msra.mxu0 0.0
    %252 = vmatprep.subr.mxu0 0.0
    %253 = vmatpush1.msra.mxu0 0.0
    %254 = vmatprep.subr.mxu0 0.0
    %255 = vmatpush1.msra.mxu0 0.0
    %256 = vmatprep.subr.mxu0 0.0
    %257 = vmatpush1.msra.mxu0 0.0
    %258 = vmatprep.subr.mxu0 0.0
    %259 = vmatpush1.msra.mxu0 0.0
    %260 = vmatprep.subr.mxu0 0.0
    %261 = vmatpush1.msra.mxu0 0.0
    %262 = vmatprep.subr.mxu0 0.0
    %263 = vmatpush1.msra.mxu0 0.0
    %264 = vmatprep.subr.mxu0 0.0
    %265 = vmatpush1.msra.mxu0 0.0
    %266 = vmatprep.subr.mxu0 0.0
    %267 = vmatpush1.msra.mxu0 0.0
    %268 = vmatprep.subr.mxu0 0.0
    %269 = vmatpush1.msra.mxu0 0.0
    %270 = vmatprep.subr.mxu0 0.0
    %271 = vmatpush1.msra.mxu0 0.0
    %272 = vmatprep.subr.mxu0 0.0
    %273 = vmatpush1.msra.mxu0 0.0
    %274 = vmatprep.subr.mxu0 0.0
    %275 = vmatpush1.msra.mxu0 0.0
    %276 = vmatprep.subr.mxu0 0.0
    %277 = vmatpush1.msra.mxu0 0.0
    %278 = vmatprep.subr.mxu0 0.0
    %279 = vmatpush1.msra.mxu0 0.0
    %280 = vmatprep.subr.mxu0 0.0
    %281 = vmatpush1.msra.mxu0 0.0
    %282 = vmatprep.subr.mxu0 0.0
    %283 = vmatpush1.msra.mxu0 0.0
    %284 = vmatprep.mubr.f32.mxu0 0.0
    %285 = vmatmul.mubr.f32.gmra.mrb[0].mxu0 %v218
    %v286 = vpop.f32.mrb[0].mxu0
    %v287 = vadd.f32 %v214, %v286
    %v288 = vpop.f32.mrb[0].mxu0
    %289 = vdwg.mxu0
    %vm290 = vcmp.lt.f32.partialorder %v201, 8000.0
    %v291 = vsel %vm290, 1, 0
    %v292 = vcvt.s32.f32 %v291
    %v293 = vadd.f32 %v292, 0.0001
    %v294 = vmul.f32 %v287, 0.15915494
    %v295 = vfloor.f32 %v294
    %v296 = vmul.f32 %v295, 6.2831855
    %v297 = vsub.f32 %v287, %v296
    %v298 = vmul.f32 %v297, 0.15915494
    %vm299 = vcmp.lt.f32.partialorder %v298, 0.7
    %v300 = vmul.f32 %v298, 4.4879894
    %v301 = vsub.f32 %v298, 0.7
    %v302 = vmul.f32 %v301, 10.471975
    %v303 = vsel %vm299, %v300, %v302
    %v304 = vsel %vm299, -0.5, 0.5
    %v305 = vand.u32 2147483647, %v303
    %vm306 = vcmp.le.f32.partialorder %v305, 0.7853982
    %vm307 = vcmp.lt.s32.totalorder %v303, 0
    %v308 = vand.u32 %v303, 2139095040
    %v309 = vshrl.u32 %v308, 23
    %v310 = vsub.s32 %v309, 127
    %v311 = vand.u32 2147483647, %v303
    %v312 = vand.u32 %v311, 8388607
    %v313 = vor.u32 %v312, 8388608
    %v314 = vsub.s32 0, %v313
    %v315 = vadd.s32 %v310, 1
    %vm316 = vcmp.gt.s32.totalorder %v315, 0
    %v317 = vsel %vm316, %v315, 0
    %v318 = vshrl.u32 %v317, 5
    %v319 = vand.u32 %v317, 31
    %v320 = vsub.s32 32, %v319
    %v321 = vshrl.u32 683565275, %v320
    %v322 = vshll.u32 683565275, %v319
    %v323 = vshrl.u32 2475754826, %v320
    %v324 = vor.u32 %v322, %v323
    %v325 = vshll.u32 2475754826, %v319
    %v326 = vshrl.u32 2131351028, %v320
    %v327 = vor.u32 %v325, %v326
    %v328 = vshll.u32 2131351028, %v319
    %v329 = vshrl.u32 2102212464, %v320
    %v330 = vor.u32 %v328, %v329
    %v331 = vshll.u32 2102212464, %v319
    %v332 = vshrl.u32 920167782, %v320
    %v333 = vor.u32 %v331, %v332
    %v334 = vshll.u32 920167782, %v319
    %v335 = vshrl.u32 1326507024, %v320
    %v336 = vor.u32 %v334, %v335
    %vm337 = vcmp.lt.s32.totalorder %v318, 1
    %vm338 = vcmp.lt.s32.totalorder %v318, 2
    %vm339 = vcmp.lt.s32.totalorder %v318, 3
    %vm340 = vcmp.lt.s32.totalorder %v318, 4
    %v341 = vsel %vm337, %v321, %v324
    %v342 = vsel %vm340, %v330, 2102212464
    %v343 = vsel %vm339, %v327, %v342
    %v344 = vsel %vm338, %v341, %v343
    %v345 = vsel %vm337, %v324, %v327
    %v346 = vsel %vm340, %v333, 920167782
    %v347 = vsel %vm339, %v330, %v346
    %v348 = vsel %vm338, %v345, %v347
    %v349 = vsel %vm337, %v327, %v330
    %v350 = vsel %vm340, %v336, 1326507024
    %v351 = vsel %vm339, %v333, %v350
    %v352 = vsel %vm338, %v349, %v351
    %v353 = vshll.u32 %v313, 8
    %v354 = vmul.u32.u64.compose %v353, %v352
    %v355 = vextract.low.u32 %v354
    %v356 = vextract.high.u32 %v354
    %v357 = vmul.u32.u64.compose %v353, %v348
    %v358 = vextract.low.u32 %v357
    %v359 = vextract.high.u32 %v357
    %v360 = vmul.u32 %v353, %v344
    %v361 = vadd.s32 %v356, %v358
    %vm362 = vc.u32 %v356, %v358
    %v363 = vadd.s32 %v359, 1
    %v364 = vsel %vm362, %v363, %v359
    %v365 = vadd.s32 %v360, %v364
    %v366 = vadd.s32 %v365, 536870912
    %v367 = vshrl.u32 %v366, 30
    %v368 = vshll.u32 %v367, 30
    %v369 = vsub.s32 %v365, %v368
    %vm370 = vcmp.lt.s32.totalorder %v369, 0
    %v371 = vsub.s32 0, %v369
    %v372 = vsel %vm370, %v371, %v369
    %v373 = vclz %v372
    %v374 = vsub.s32 %v373, 2
    %vm375 = vcmp.gt.s32.totalorder 0, %v374
    %v376 = vsel %vm375, 0, %v374
    %v377 = vsub.s32 32, %v376
    %v378 = vshll.u32 %v369, %v376
    %v379 = vshrl.u32 %v361, %v377
    %v380 = vor.u32 %v378, %v379
    %v381 = vsub.s32 4294967266, %v376
    %v382 = vadd.s32 %v381, 127
    %v383 = vshll.u32 %v382, 23
    %v384 = vor.u32 4788187, %v383
    %v385 = vand.u32 2147483647, %v384
    %v387 = vcvt.s32.f32 %v380
    %v388 = vmul.f32 %v387, %v385
    %v389 = vxor.u32 %v388, 2147483648
    %v390 = vsel %vm307, %v389, %v388
    %v391 = vsub.s32 4, %v367
    %v392 = vsel %vm307, %v391, %v367
    %v393 = vsel %vm306, %v303, %v390
    %v394 = vsel %vm306, 0, %v392
    %v395 = vcosq.f32.pop %v393
    %v396 = vsinq.f32.pop %v393
    %vm397 = vweird.f32 %v303
    %v398 = vand.u32 %v394, 3
    %vm399 = vcmp.lt.s32.totalorder %v398, 2
    %vm400 = vcmp.eq.s32.totalorder %v398, 0
    %v401 = vxor.u32 %v396, 2147483648
    %v402 = vsel %vm400, %v395, %v401
    %vm403 = vcmp.eq.s32.totalorder %v398, 2
    %v404 = vxor.u32 %v395, 2147483648
    %v405 = vsel %vm403, %v404, %v396
    %v406 = vsel %vm399, %v402, %v405
    %v407 = vsel %vm397, nan, %v406
    %v408 = vmul.f32 %v304, %v407
    %v409 = vld [vmem:[#allocation2] sm:$0x3]
    %v410 = vmul.f32 %v409, %v293
    %v411 = vmul.f32 %v408, %v410
    %v412 = vmul.f32 %v287, 2.0
    %v413 = vmul.f32 %v287, 0.5
    %v414 = vmul.f32 %v412, 0.5
    %v415 = vadd.f32 %v413, %v414
    %v416 = vmul.f32 %v201, 2.0
    %vm417 = vcmp.lt.f32.partialorder %v416, 8000.0
    %v418 = vsel %vm417, 1, 0
    %v419 = vcvt.s32.f32 %v418
    %v420 = vadd.f32 %v419, 0.0001
    %v421 = vmul.f32 %v415, 0.15915494
    %v422 = vfloor.f32 %v421
    %v423 = vmul.f32 %v422, 6.2831855
    %v424 = vsub.f32 %v415, %v423
    %v425 = vmul.f32 %v424, 0.15915494
    %vm426 = vcmp.lt.f32.partialorder %v425, 0.7
    %v427 = vmul.f32 %v425, 4.4879894
    %v428 = vsub.f32 %v425, 0.7
    %v429 = vmul.f32 %v428, 10.471975
    %v430 = vsel %vm426, %v427, %v429
    %v431 = vsel %vm426, -0.5, 0.5
    %v432 = vand.u32 2147483647, %v430
    %vm433 = vcmp.le.f32.partialorder %v432, 0.7853982
    %vm434 = vcmp.lt.s32.totalorder %v430, 0
    %v435 = vand.u32 %v430, 2139095040
    %v436 = vshrl.u32 %v435, 23
    %v437 = vsub.s32 %v436, 127
    %v438 = vand.u32 2147483647, %v430
    %v439 = vand.u32 %v438, 8388607
    %v440 = vor.u32 %v439, 8388608
    %v441 = vsub.s32 0, %v440
    %v442 = vadd.s32 %v437, 1
    %vm443 = vcmp.gt.s32.totalorder %v442, 0
    %v444 = vsel %vm443, %v442, 0
    %v445 = vshrl.u32 %v444, 5
    %v446 = vand.u32 %v444, 31
    %v447 = vsub.s32 32, %v446
    %v448 = vshrl.u32 683565275, %v447
    %v449 = vshll.u32 683565275, %v446
    %v450 = vshrl.u32 2475754826, %v447
    %v451 = vor.u32 %v449, %v450
    %v452 = vshll.u32 2475754826, %v446
    %v453 = vshrl.u32 2131351028, %v447
    %v454 = vor.u32 %v452, %v453
    %v455 = vshll.u32 2131351028, %v446
    %v456 = vshrl.u32 2102212464, %v447
    %v457 = vor.u32 %v455, %v456
    %v458 = vshll.u32 2102212464, %v446
    %v459 = vshrl.u32 920167782, %v447
    %v460 = vor.u32 %v458, %v459
    %v461 = vshll.u32 920167782, %v446
    %v462 = vshrl.u32 1326507024, %v447
    %v463 = vor.u32 %v461, %v462
    %vm464 = vcmp.lt.s32.totalorder %v445, 1
    %vm465 = vcmp.lt.s32.totalorder %v445, 2
    %vm466 = vcmp.lt.s32.totalorder %v445, 3
    %vm467 = vcmp.lt.s32.totalorder %v445, 4
    %v468 = vsel %vm464, %v448, %v451
    %v469 = vsel %vm467, %v457, 2102212464
    %v470 = vsel %vm466, %v454, %v469
    %v471 = vsel %vm465, %v468, %v470
    %v472 = vsel %vm464, %v451, %v454
    %v473 = vsel %vm467, %v460, 920167782
    %v474 = vsel %vm466, %v457, %v473
    %v475 = vsel %vm465, %v472, %v474
    %v476 = vsel %vm464, %v454, %v457
    %v477 = vsel %vm467, %v463, 1326507024
    %v478 = vsel %vm466, %v460, %v477
    %v479 = vsel %vm465, %v476, %v478
    %v480 = vshll.u32 %v440, 8
    %v481 = vmul.u32.u64.compose %v480, %v479
    %v482 = vextract.low.u32 %v481
    %v483 = vextract.high.u32 %v481
    %v484 = vmul.u32.u64.compose %v480, %v475
    %v485 = vextract.low.u32 %v484
    %v486 = vextract.high.u32 %v484
    %v487 = vmul.u32 %v480, %v471
    %v488 = vadd.s32 %v483, %v485
    %vm489 = vc.u32 %v483, %v485
    %v490 = vadd.s32 %v486, 1
    %v491 = vsel %vm489, %v490, %v486
    %v492 = vadd.s32 %v487, %v491
    %v493 = vadd.s32 %v492, 536870912
    %v494 = vshrl.u32 %v493, 30
    %v495 = vshll.u32 %v494, 30
    %v496 = vsub.s32 %v492, %v495
    %vm497 = vcmp.lt.s32.totalorder %v496, 0
    %v498 = vsub.s32 0, %v496
    %v499 = vsel %vm497, %v498, %v496
    %v500 = vclz %v499
    %v501 = vsub.s32 %v500, 2
    %vm502 = vcmp.gt.s32.totalorder 0, %v501
    %v503 = vsel %vm502, 0, %v501
    %v504 = vsub.s32 32, %v503
    %v505 = vshll.u32 %v496, %v503
    %v506 = vshrl.u32 %v488, %v504
    %v507 = vor.u32 %v505, %v506
    %v508 = vsub.s32 4294967266, %v503
    %v509 = vadd.s32 %v508, 127
    %v510 = vshll.u32 %v509, 23
    %v511 = vor.u32 4788187, %v510
    %v512 = vand.u32 2147483647, %v511
    %v514 = vcvt.s32.f32 %v507
    %v515 = vmul.f32 %v514, %v512
    %v516 = vxor.u32 %v515, 2147483648
    %v517 = vsel %vm434, %v516, %v515
    %v518 = vsub.s32 4, %v494
    %v519 = vsel %vm434, %v518, %v494
    %v520 = vsel %vm433, %v430, %v517
    %v521 = vsel %vm433, 0, %v519
    %v522 = vcosq.f32.pop %v520
    %v523 = vsinq.f32.pop %v520
    %vm524 = vweird.f32 %v430
    %v525 = vand.u32 %v521, 3
    %vm526 = vcmp.lt.s32.totalorder %v525, 2
    %vm527 = vcmp.eq.s32.totalorder %v525, 0
    %v528 = vxor.u32 %v523, 2147483648
    %v529 = vsel %vm527, %v522, %v528
    %vm530 = vcmp.eq.s32.totalorder %v525, 2
    %v531 = vxor.u32 %v522, 2147483648
    %v532 = vsel %vm530, %v531, %v523
    %v533 = vsel %vm526, %v529, %v532
    %v534 = vsel %vm524, nan, %v533
    %v535 = vmul.f32 %v431, %v534
    %s536 = scalar_lea.vmem [#allocation2], 2
    %v537 = vld [vmem:[%s536] sm:$0x3]
    %v538 = vmul.f32 %v537, %v420
    %v539 = vmul.f32 %v535, %v538
    %v540 = vadd.f32 %v411, %v539
    %v541 = vmul.f32 %v287, 3.0
    %v542 = vmul.f32 %v541, 0.5
    %v543 = vadd.f32 %v414, %v542
    %v544 = vmul.f32 %v201, 3.0
    %vm545 = vcmp.lt.f32.partialorder %v544, 8000.0
    %v546 = vsel %vm545, 1, 0
    %v547 = vcvt.s32.f32 %v546
    %v548 = vadd.f32 %v547, 0.0001
    %v549 = vmul.f32 %v543, 0.15915494
    %v550 = vfloor.f32 %v549
    %v551 = vmul.f32 %v550, 6.2831855
    %v552 = vsub.f32 %v543, %v551
    %v553 = vmul.f32 %v552, 0.15915494
    %vm554 = vcmp.lt.f32.partialorder %v553, 0.7
    %v555 = vmul.f32 %v553, 4.4879894
    %v556 = vsub.f32 %v553, 0.7
    %v557 = vmul.f32 %v556, 10.471975
    %v558 = vsel %vm554, %v555, %v557
    %v559 = vsel %vm554, -0.5, 0.5
    %v560 = vand.u32 2147483647, %v558
    %vm561 = vcmp.le.f32.partialorder %v560, 0.7853982
    %vm562 = vcmp.lt.s32.totalorder %v558, 0
    %v563 = vand.u32 %v558, 2139095040
    %v564 = vshrl.u32 %v563, 23
    %v565 = vsub.s32 %v564, 127
    %v566 = vand.u32 2147483647, %v558
    %v567 = vand.u32 %v566, 8388607
    %v568 = vor.u32 %v567, 8388608
    %v569 = vsub.s32 0, %v568
    %v570 = vadd.s32 %v565, 1
    %vm571 = vcmp.gt.s32.totalorder %v570, 0
    %v572 = vsel %vm571, %v570, 0
    %v573 = vshrl.u32 %v572, 5
    %v574 = vand.u32 %v572, 31
    %v575 = vsub.s32 32, %v574
    %v576 = vshrl.u32 683565275, %v575
    %v577 = vshll.u32 683565275, %v574
    %v578 = vshrl.u32 2475754826, %v575
    %v579 = vor.u32 %v577, %v578
    %v580 = vshll.u32 2475754826, %v574
    %v581 = vshrl.u32 2131351028, %v575
    %v582 = vor.u32 %v580, %v581
    %v583 = vshll.u32 2131351028, %v574
    %v584 = vshrl.u32 2102212464, %v575
    %v585 = vor.u32 %v583, %v584
    %v586 = vshll.u32 2102212464, %v574
    %v587 = vshrl.u32 920167782, %v575
    %v588 = vor.u32 %v586, %v587
    %v589 = vshll.u32 920167782, %v574
    %v590 = vshrl.u32 1326507024, %v575
    %v591 = vor.u32 %v589, %v590
    %vm592 = vcmp.lt.s32.totalorder %v573, 1
    %vm593 = vcmp.lt.s32.totalorder %v573, 2
    %vm594 = vcmp.lt.s32.totalorder %v573, 3
    %vm595 = vcmp.lt.s32.totalorder %v573, 4
    %v596 = vsel %vm592, %v576, %v579
    %v597 = vsel %vm595, %v585, 2102212464
    %v598 = vsel %vm594, %v582, %v597
    %v599 = vsel %vm593, %v596, %v598
    %v600 = vsel %vm592, %v579, %v582
    %v601 = vsel %vm595, %v588, 920167782
    %v602 = vsel %vm594, %v585, %v601
    %v603 = vsel %vm593, %v600, %v602
    %v604 = vsel %vm592, %v582, %v585
    %v605 = vsel %vm595, %v591, 1326507024
    %v606 = vsel %vm594, %v588, %v605
    %v607 = vsel %vm593, %v604, %v606
    %v608 = vshll.u32 %v568, 8
    %v609 = vmul.u32.u64.compose %v608, %v607
    %v610 = vextract.low.u32 %v609
    %v611 = vextract.high.u32 %v609
    %v612 = vmul.u32.u64.compose %v608, %v603
    %v613 = vextract.low.u32 %v612
    %v614 = vextract.high.u32 %v612
    %v615 = vmul.u32 %v608, %v599
    %v616 = vadd.s32 %v611, %v613
    %vm617 = vc.u32 %v611, %v613
    %v618 = vadd.s32 %v614, 1
    %v619 = vsel %vm617, %v618, %v614
    %v620 = vadd.s32 %v615, %v619
    %v621 = vadd.s32 %v620, 536870912
    %v622 = vshrl.u32 %v621, 30
    %v623 = vshll.u32 %v622, 30
    %v624 = vsub.s32 %v620, %v623
    %vm625 = vcmp.lt.s32.totalorder %v624, 0
    %v626 = vsub.s32 0, %v624
    %v627 = vsel %vm625, %v626, %v624
    %v628 = vclz %v627
    %v629 = vsub.s32 %v628, 2
    %vm630 = vcmp.gt.s32.totalorder 0, %v629
    %v631 = vsel %vm630, 0, %v629
    %v632 = vsub.s32 32, %v631
    %v633 = vshll.u32 %v624, %v631
    %v634 = vshrl.u32 %v616, %v632
    %v635 = vor.u32 %v633, %v634
    %v636 = vsub.s32 4294967266, %v631
    %v637 = vadd.s32 %v636, 127
    %v638 = vshll.u32 %v637, 23
    %v639 = vor.u32 4788187, %v638
    %v640 = vand.u32 2147483647, %v639
    %v642 = vcvt.s32.f32 %v635
    %v643 = vmul.f32 %v642, %v640
    %v644 = vxor.u32 %v643, 2147483648
    %v645 = vsel %vm562, %v644, %v643
    %v646 = vsub.s32 4, %v622
    %v647 = vsel %vm562, %v646, %v622
    %v648 = vsel %vm561, %v558, %v645
    %v649 = vsel %vm561, 0, %v647
    %v650 = vcosq.f32.pop %v648
    %v651 = vsinq.f32.pop %v648
    %vm652 = vweird.f32 %v558
    %v653 = vand.u32 %v649, 3
    %vm654 = vcmp.lt.s32.totalorder %v653, 2
    %vm655 = vcmp.eq.s32.totalorder %v653, 0
    %v656 = vxor.u32 %v651, 2147483648
    %v657 = vsel %vm655, %v650, %v656
    %vm658 = vcmp.eq.s32.totalorder %v653, 2
    %v659 = vxor.u32 %v650, 2147483648
    %v660 = vsel %vm658, %v659, %v651
    %v661 = vsel %vm654, %v657, %v660
    %v662 = vsel %vm652, nan, %v661
    %v663 = vmul.f32 %v559, %v662
    %s664 = scalar_lea.vmem [#allocation2], 4
    %v665 = vld [vmem:[%s664] sm:$0x3]
    %v666 = vmul.f32 %v665, %v548
    %v667 = vmul.f32 %v663, %v666
    %v668 = vadd.f32 %v540, %v667
    %v669 = vmul.f32 %v287, 4.0
    %v670 = vmul.f32 %v669, 0.5
    %v671 = vadd.f32 %v542, %v670
    %v672 = vmul.f32 %v201, 4.0
    %vm673 = vcmp.lt.f32.partialorder %v672, 8000.0
    %v674 = vsel %vm673, 1, 0
    %v675 = vcvt.s32.f32 %v674
    %v676 = vadd.f32 %v675, 0.0001
    %v677 = vmul.f32 %v671, 0.15915494
    %v678 = vfloor.f32 %v677
    %v679 = vmul.f32 %v678, 6.2831855
    %v680 = vsub.f32 %v671, %v679
    %v681 = vmul.f32 %v680, 0.15915494
    %vm682 = vcmp.lt.f32.partialorder %v681, 0.7
    %v683 = vmul.f32 %v681, 4.4879894
    %v684 = vsub.f32 %v681, 0.7
    %v685 = vmul.f32 %v684, 10.471975
    %v686 = vsel %vm682, %v683, %v685
    %v687 = vsel %vm682, -0.5, 0.5
    %v688 = vand.u32 2147483647, %v686
    %vm689 = vcmp.le.f32.partialorder %v688, 0.7853982
    %vm690 = vcmp.lt.s32.totalorder %v686, 0
    %v691 = vand.u32 %v686, 2139095040
    %v692 = vshrl.u32 %v691, 23
    %v693 = vsub.s32 %v692, 127
    %v694 = vand.u32 2147483647, %v686
    %v695 = vand.u32 %v694, 8388607
    %v696 = vor.u32 %v695, 8388608
    %v697 = vsub.s32 0, %v696
    %v698 = vadd.s32 %v693, 1
    %vm699 = vcmp.gt.s32.totalorder %v698, 0
    %v700 = vsel %vm699, %v698, 0
    %v701 = vshrl.u32 %v700, 5
    %v702 = vand.u32 %v700, 31
    %v703 = vsub.s32 32, %v702
    %v704 = vshrl.u32 683565275, %v703
    %v705 = vshll.u32 683565275, %v702
    %v706 = vshrl.u32 2475754826, %v703
    %v707 = vor.u32 %v705, %v706
    %v708 = vshll.u32 2475754826, %v702
    %v709 = vshrl.u32 2131351028, %v703
    %v710 = vor.u32 %v708, %v709
    %v711 = vshll.u32 2131351028, %v702
    %v712 = vshrl.u32 2102212464, %v703
    %v713 = vor.u32 %v711, %v712
    %v714 = vshll.u32 2102212464, %v702
    %v715 = vshrl.u32 920167782, %v703
    %v716 = vor.u32 %v714, %v715
    %v717 = vshll.u32 920167782, %v702
    %v718 = vshrl.u32 1326507024, %v703
    %v719 = vor.u32 %v717, %v718
    %vm720 = vcmp.lt.s32.totalorder %v701, 1
    %vm721 = vcmp.lt.s32.totalorder %v701, 2
    %vm722 = vcmp.lt.s32.totalorder %v701, 3
    %vm723 = vcmp.lt.s32.totalorder %v701, 4
    %v724 = vsel %vm720, %v704, %v707
    %v725 = vsel %vm723, %v713, 2102212464
    %v726 = vsel %vm722, %v710, %v725
    %v727 = vsel %vm721, %v724, %v726
    %v728 = vsel %vm720, %v707, %v710
    %v729 = vsel %vm723, %v716, 920167782
    %v730 = vsel %vm722, %v713, %v729
    %v731 = vsel %vm721, %v728, %v730
    %v732 = vsel %vm720, %v710, %v713
    %v733 = vsel %vm723, %v719, 1326507024
    %v734 = vsel %vm722, %v716, %v733
    %v735 = vsel %vm721, %v732, %v734
    %v736 = vshll.u32 %v696, 8
    %v737 = vmul.u32.u64.compose %v736, %v735
    %v738 = vextract.low.u32 %v737
    %v739 = vextract.high.u32 %v737
    %v740 = vmul.u32.u64.compose %v736, %v731
    %v741 = vextract.low.u32 %v740
    %v742 = vextract.high.u32 %v740
    %v743 = vmul.u32 %v736, %v727
    %v744 = vadd.s32 %v739, %v741
    %vm745 = vc.u32 %v739, %v741
    %v746 = vadd.s32 %v742, 1
    %v747 = vsel %vm745, %v746, %v742
    %v748 = vadd.s32 %v743, %v747
    %v749 = vadd.s32 %v748, 536870912
    %v750 = vshrl.u32 %v749, 30
    %v751 = vshll.u32 %v750, 30
    %v752 = vsub.s32 %v748, %v751
    %vm753 = vcmp.lt.s32.totalorder %v752, 0
    %v754 = vsub.s32 0, %v752
    %v755 = vsel %vm753, %v754, %v752
    %v756 = vclz %v755
    %v757 = vsub.s32 %v756, 2
    %vm758 = vcmp.gt.s32.totalorder 0, %v757
    %v759 = vsel %vm758, 0, %v757
    %v760 = vsub.s32 32, %v759
    %v761 = vshll.u32 %v752, %v759
    %v762 = vshrl.u32 %v744, %v760
    %v763 = vor.u32 %v761, %v762
    %v764 = vsub.s32 4294967266, %v759
    %v765 = vadd.s32 %v764, 127
    %v766 = vshll.u32 %v765, 23
    %v767 = vor.u32 4788187, %v766
    %v768 = vand.u32 2147483647, %v767
    %v770 = vcvt.s32.f32 %v763
    %v771 = vmul.f32 %v770, %v768
    %v772 = vxor.u32 %v771, 2147483648
    %v773 = vsel %vm690, %v772, %v771
    %v774 = vsub.s32 4, %v750
    %v775 = vsel %vm690, %v774, %v750
    %v776 = vsel %vm689, %v686, %v773
    %v777 = vsel %vm689, 0, %v775
    %v778 = vcosq.f32.pop %v776
    %v779 = vsinq.f32.pop %v776
    %vm780 = vweird.f32 %v686
    %v781 = vand.u32 %v777, 3
    %vm782 = vcmp.lt.s32.totalorder %v781, 2
    %vm783 = vcmp.eq.s32.totalorder %v781, 0
    %v784 = vxor.u32 %v779, 2147483648
    %v785 = vsel %vm783, %v778, %v784
    %vm786 = vcmp.eq.s32.totalorder %v781, 2
    %v787 = vxor.u32 %v778, 2147483648
    %v788 = vsel %vm786, %v787, %v779
    %v789 = vsel %vm782, %v785, %v788
    %v790 = vsel %vm780, nan, %v789
    %v791 = vmul.f32 %v687, %v790
    %s792 = scalar_lea.vmem [#allocation2], 6
    %v793 = vld [vmem:[%s792] sm:$0x3]
    %v794 = vmul.f32 %v793, %v676
    %v795 = vmul.f32 %v791, %v794
    %v796 = vadd.f32 %v668, %v795
    %v797 = vmul.f32 %v287, 5.0
    %v798 = vmul.f32 %v797, 0.5
    %v799 = vadd.f32 %v670, %v798
    %v800 = vmul.f32 %v201, 5.0
    %vm801 = vcmp.lt.f32.partialorder %v800, 8000.0
    %v802 = vsel %vm801, 1, 0
    %v803 = vcvt.s32.f32 %v802
    %v804 = vadd.f32 %v803, 0.0001
    %v805 = vmul.f32 %v799, 0.15915494
    %v806 = vfloor.f32 %v805
    %v807 = vmul.f32 %v806, 6.2831855
    %v808 = vsub.f32 %v799, %v807
    %v809 = vmul.f32 %v808, 0.15915494
    %vm810 = vcmp.lt.f32.partialorder %v809, 0.7
    %v811 = vmul.f32 %v809, 4.4879894
    %v812 = vsub.f32 %v809, 0.7
    %v813 = vmul.f32 %v812, 10.471975
    %v814 = vsel %vm810, %v811, %v813
    %v815 = vsel %vm810, -0.5, 0.5
    %v816 = vand.u32 2147483647, %v814
    %vm817 = vcmp.le.f32.partialorder %v816, 0.7853982
    %vm818 = vcmp.lt.s32.totalorder %v814, 0
    %v819 = vand.u32 %v814, 2139095040
    %v820 = vshrl.u32 %v819, 23
    %v821 = vsub.s32 %v820, 127
    %v822 = vand.u32 2147483647, %v814
    %v823 = vand.u32 %v822, 8388607
    %v824 = vor.u32 %v823, 8388608
    %v825 = vsub.s32 0, %v824
    %v826 = vadd.s32 %v821, 1
    %vm827 = vcmp.gt.s32.totalorder %v826, 0
    %v828 = vsel %vm827, %v826, 0
    %v829 = vshrl.u32 %v828, 5
    %v830 = vand.u32 %v828, 31
    %v831 = vsub.s32 32, %v830
    %v832 = vshrl.u32 683565275, %v831
    %v833 = vshll.u32 683565275, %v830
    %v834 = vshrl.u32 2475754826, %v831
    %v835 = vor.u32 %v833, %v834
    %v836 = vshll.u32 2475754826, %v830
    %v837 = vshrl.u32 2131351028, %v831
    %v838 = vor.u32 %v836, %v837
    %v839 = vshll.u32 2131351028, %v830
    %v840 = vshrl.u32 2102212464, %v831
    %v841 = vor.u32 %v839, %v840
    %v842 = vshll.u32 2102212464, %v830
    %v843 = vshrl.u32 920167782, %v831
    %v844 = vor.u32 %v842, %v843
    %v845 = vshll.u32 920167782, %v830
    %v846 = vshrl.u32 1326507024, %v831
    %v847 = vor.u32 %v845, %v846
    %vm848 = vcmp.lt.s32.totalorder %v829, 1
    %vm849 = vcmp.lt.s32.totalorder %v829, 2
    %vm850 = vcmp.lt.s32.totalorder %v829, 3
    %vm851 = vcmp.lt.s32.totalorder %v829, 4
    %v852 = vsel %vm848, %v832, %v835
    %v853 = vsel %vm851, %v841, 2102212464
    %v854 = vsel %vm850, %v838, %v853
    %v855 = vsel %vm849, %v852, %v854
    %v856 = vsel %vm848, %v835, %v838
    %v857 = vsel %vm851, %v844, 920167782
    %v858 = vsel %vm850, %v841, %v857
    %v859 = vsel %vm849, %v856, %v858
    %v860 = vsel %vm848, %v838, %v841
    %v861 = vsel %vm851, %v847, 1326507024
    %v862 = vsel %vm850, %v844, %v861
    %v863 = vsel %vm849, %v860, %v862
    %v864 = vshll.u32 %v824, 8
    %v865 = vmul.u32.u64.compose %v864, %v863
    %v866 = vextract.low.u32 %v865
    %v867 = vextract.high.u32 %v865
    %v868 = vmul.u32.u64.compose %v864, %v859
    %v869 = vextract.low.u32 %v868
    %v870 = vextract.high.u32 %v868
    %v871 = vmul.u32 %v864, %v855
    %v872 = vadd.s32 %v867, %v869
    %vm873 = vc.u32 %v867, %v869
    %v874 = vadd.s32 %v870, 1
    %v875 = vsel %vm873, %v874, %v870
    %v876 = vadd.s32 %v871, %v875
    %v877 = vadd.s32 %v876, 536870912
    %v878 = vshrl.u32 %v877, 30
    %v879 = vshll.u32 %v878, 30
    %v880 = vsub.s32 %v876, %v879
    %vm881 = vcmp.lt.s32.totalorder %v880, 0
    %v882 = vsub.s32 0, %v880
    %v883 = vsel %vm881, %v882, %v880
    %v884 = vclz %v883
    %v885 = vsub.s32 %v884, 2
    %vm886 = vcmp.gt.s32.totalorder 0, %v885
    %v887 = vsel %vm886, 0, %v885
    %v888 = vsub.s32 32, %v887
    %v889 = vshll.u32 %v880, %v887
    %v890 = vshrl.u32 %v872, %v888
    %v891 = vor.u32 %v889, %v890
    %v892 = vsub.s32 4294967266, %v887
    %v893 = vadd.s32 %v892, 127
    %v894 = vshll.u32 %v893, 23
    %v895 = vor.u32 4788187, %v894
    %v896 = vand.u32 2147483647, %v895
    %v898 = vcvt.s32.f32 %v891
    %v899 = vmul.f32 %v898, %v896
    %v900 = vxor.u32 %v899, 2147483648
    %v901 = vsel %vm818, %v900, %v899
    %v902 = vsub.s32 4, %v878
    %v903 = vsel %vm818, %v902, %v878
    %v904 = vsel %vm817, %v814, %v901
    %v905 = vsel %vm817, 0, %v903
    %v906 = vcosq.f32.pop %v904
    %v907 = vsinq.f32.pop %v904
    %vm908 = vweird.f32 %v814
    %v909 = vand.u32 %v905, 3
    %vm910 = vcmp.lt.s32.totalorder %v909, 2
    %vm911 = vcmp.eq.s32.totalorder %v909, 0
    %v912 = vxor.u32 %v907, 2147483648
    %v913 = vsel %vm911, %v906, %v912
    %vm914 = vcmp.eq.s32.totalorder %v909, 2
    %v915 = vxor.u32 %v906, 2147483648
    %v916 = vsel %vm914, %v915, %v907
    %v917 = vsel %vm910, %v913, %v916
    %v918 = vsel %vm908, nan, %v917
    %v919 = vmul.f32 %v815, %v918
    %s920 = scalar_lea.vmem [#allocation2], 8
    %v921 = vld [vmem:[%s920] sm:$0x3]
    %v922 = vmul.f32 %v921, %v804
    %v923 = vmul.f32 %v919, %v922
    %v924 = vadd.f32 %v796, %v923
    %v925 = vmul.f32 %v287, 6.0
    %v926 = vmul.f32 %v925, 0.5
    %v927 = vadd.f32 %v798, %v926
    %v928 = vmul.f32 %v201, 6.0
    %vm929 = vcmp.lt.f32.partialorder %v928, 8000.0
    %v930 = vsel %vm929, 1, 0
    %v931 = vcvt.s32.f32 %v930
    %v932 = vadd.f32 %v931, 0.0001
    %v933 = vmul.f32 %v927, 0.15915494
    %v934 = vfloor.f32 %v933
    %v935 = vmul.f32 %v934, 6.2831855
    %v936 = vsub.f32 %v927, %v935
    %v937 = vmul.f32 %v936, 0.15915494
    %vm938 = vcmp.lt.f32.partialorder %v937, 0.7
    %v939 = vmul.f32 %v937, 4.4879894
    %v940 = vsub.f32 %v937, 0.7
    %v941 = vmul.f32 %v940, 10.471975
    %v942 = vsel %vm938, %v939, %v941
    %v943 = vsel %vm938, -0.5, 0.5
    %v944 = vand.u32 2147483647, %v942
    %vm945 = vcmp.le.f32.partialorder %v944, 0.7853982
    %vm946 = vcmp.lt.s32.totalorder %v942, 0
    %v947 = vand.u32 %v942, 2139095040
    %v948 = vshrl.u32 %v947, 23
    %v949 = vsub.s32 %v948, 127
    %v950 = vand.u32 2147483647, %v942
    %v951 = vand.u32 %v950, 8388607
    %v952 = vor.u32 %v951, 8388608
    %v953 = vsub.s32 0, %v952
    %v954 = vadd.s32 %v949, 1
    %vm955 = vcmp.gt.s32.totalorder %v954, 0
    %v956 = vsel %vm955, %v954, 0
    %v957 = vshrl.u32 %v956, 5
    %v958 = vand.u32 %v956, 31
    %v959 = vsub.s32 32, %v958
    %v960 = vshrl.u32 683565275, %v959
    %v961 = vshll.u32 683565275, %v958
    %v962 = vshrl.u32 2475754826, %v959
    %v963 = vor.u32 %v961, %v962
    %v964 = vshll.u32 2475754826, %v958
    %v965 = vshrl.u32 2131351028, %v959
    %v966 = vor.u32 %v964, %v965
    %v967 = vshll.u32 2131351028, %v958
    %v968 = vshrl.u32 2102212464, %v959
    %v969 = vor.u32 %v967, %v968
    %v970 = vshll.u32 2102212464, %v958
    %v971 = vshrl.u32 920167782, %v959
    %v972 = vor.u32 %v970, %v971
    %v973 = vshll.u32 920167782, %v958
    %v974 = vshrl.u32 1326507024, %v959
    %v975 = vor.u32 %v973, %v974
    %vm976 = vcmp.lt.s32.totalorder %v957, 1
    %vm977 = vcmp.lt.s32.totalorder %v957, 2
    %vm978 = vcmp.lt.s32.totalorder %v957, 3
    %vm979 = vcmp.lt.s32.totalorder %v957, 4
    %v980 = vsel %vm976, %v960, %v963
    %v981 = vsel %vm979, %v969, 2102212464
    %v982 = vsel %vm978, %v966, %v981
    %v983 = vsel %vm977, %v980, %v982
    %v984 = vsel %vm976, %v963, %v966
    %v985 = vsel %vm979, %v972, 920167782
    %v986 = vsel %vm978, %v969, %v985
    %v987 = vsel %vm977, %v984, %v986
    %v988 = vsel %vm976, %v966, %v969
    %v989 = vsel %vm979, %v975, 1326507024
    %v990 = vsel %vm978, %v972, %v989
    %v991 = vsel %vm977, %v988, %v990
    %v992 = vshll.u32 %v952, 8
    %v993 = vmul.u32.u64.compose %v992, %v991
    %v994 = vextract.low.u32 %v993
    %v995 = vextract.high.u32 %v993
    %v996 = vmul.u32.u64.compose %v992, %v987
    %v997 = vextract.low.u32 %v996
    %v998 = vextract.high.u32 %v996
    %v999 = vmul.u32 %v992, %v983
    %v1000 = vadd.s32 %v995, %v997
    %vm1001 = vc.u32 %v995, %v997
    %v1002 = vadd.s32 %v998, 1
    %v1003 = vsel %vm1001, %v1002, %v998
    %v1004 = vadd.s32 %v999, %v1003
    %v1005 = vadd.s32 %v1004, 536870912
    %v1006 = vshrl.u32 %v1005, 30
    %v1007 = vshll.u32 %v1006, 30
    %v1008 = vsub.s32 %v1004, %v1007
    %vm1009 = vcmp.lt.s32.totalorder %v1008, 0
    %v1010 = vsub.s32 0, %v1008
    %v1011 = vsel %vm1009, %v1010, %v1008
    %v1012 = vclz %v1011
    %v1013 = vsub.s32 %v1012, 2
    %vm1014 = vcmp.gt.s32.totalorder 0, %v1013
    %v1015 = vsel %vm1014, 0, %v1013
    %v1016 = vsub.s32 32, %v1015
    %v1017 = vshll.u32 %v1008, %v1015
    %v1018 = vshrl.u32 %v1000, %v1016
    %v1019 = vor.u32 %v1017, %v1018
    %v1020 = vsub.s32 4294967266, %v1015
    %v1021 = vadd.s32 %v1020, 127
    %v1022 = vshll.u32 %v1021, 23
    %v1023 = vor.u32 4788187, %v1022
    %v1024 = vand.u32 2147483647, %v1023
    %v1026 = vcvt.s32.f32 %v1019
    %v1027 = vmul.f32 %v1026, %v1024
    %v1028 = vxor.u32 %v1027, 2147483648
    %v1029 = vsel %vm946, %v1028, %v1027
    %v1030 = vsub.s32 4, %v1006
    %v1031 = vsel %vm946, %v1030, %v1006
    %v1032 = vsel %vm945, %v942, %v1029
    %v1033 = vsel %vm945, 0, %v1031
    %v1034 = vcosq.f32.pop %v1032
    %v1035 = vsinq.f32.pop %v1032
    %vm1036 = vweird.f32 %v942
    %v1037 = vand.u32 %v1033, 3
    %vm1038 = vcmp.lt.s32.totalorder %v1037, 2
    %vm1039 = vcmp.eq.s32.totalorder %v1037, 0
    %v1040 = vxor.u32 %v1035, 2147483648
    %v1041 = vsel %vm1039, %v1034, %v1040
    %vm1042 = vcmp.eq.s32.totalorder %v1037, 2
    %v1043 = vxor.u32 %v1034, 2147483648
    %v1044 = vsel %vm1042, %v1043, %v1035
    %v1045 = vsel %vm1038, %v1041, %v1044
    %v1046 = vsel %vm1036, nan, %v1045
    %v1047 = vmul.f32 %v943, %v1046
    %s1048 = scalar_lea.vmem [#allocation2], 10
    %v1049 = vld [vmem:[%s1048] sm:$0x3]
    %v1050 = vmul.f32 %v1049, %v932
    %v1051 = vmul.f32 %v1047, %v1050
    %v1052 = vadd.f32 %v924, %v1051
    %v1053 = vmul.f32 %v287, 7.0
    %v1054 = vmul.f32 %v1053, 0.5
    %v1055 = vadd.f32 %v926, %v1054
    %v1056 = vmul.f32 %v201, 7.0
    %vm1057 = vcmp.lt.f32.partialorder %v1056, 8000.0
    %v1058 = vsel %vm1057, 1, 0
    %v1059 = vcvt.s32.f32 %v1058
    %v1060 = vadd.f32 %v1059, 0.0001
    %v1061 = vmul.f32 %v1055, 0.15915494
    %v1062 = vfloor.f32 %v1061
    %v1063 = vmul.f32 %v1062, 6.2831855
    %v1064 = vsub.f32 %v1055, %v1063
    %v1065 = vmul.f32 %v1064, 0.15915494
    %vm1066 = vcmp.lt.f32.partialorder %v1065, 0.7
    %v1067 = vmul.f32 %v1065, 4.4879894
    %v1068 = vsub.f32 %v1065, 0.7
    %v1069 = vmul.f32 %v1068, 10.471975
    %v1070 = vsel %vm1066, %v1067, %v1069
    %v1071 = vsel %vm1066, -0.5, 0.5
    %v1072 = vand.u32 2147483647, %v1070
    %vm1073 = vcmp.le.f32.partialorder %v1072, 0.7853982
    %vm1074 = vcmp.lt.s32.totalorder %v1070, 0
    %v1075 = vand.u32 %v1070, 2139095040
    %v1076 = vshrl.u32 %v1075, 23
    %v1077 = vsub.s32 %v1076, 127
    %v1078 = vand.u32 2147483647, %v1070
    %v1079 = vand.u32 %v1078, 8388607
    %v1080 = vor.u32 %v1079, 8388608
    %v1081 = vsub.s32 0, %v1080
    %v1082 = vadd.s32 %v1077, 1
    %vm1083 = vcmp.gt.s32.totalorder %v1082, 0
    %v1084 = vsel %vm1083, %v1082, 0
    %v1085 = vshrl.u32 %v1084, 5
    %v1086 = vand.u32 %v1084, 31
    %v1087 = vsub.s32 32, %v1086
    %v1088 = vshrl.u32 683565275, %v1087
    %v1089 = vshll.u32 683565275, %v1086
    %v1090 = vshrl.u32 2475754826, %v1087
    %v1091 = vor.u32 %v1089, %v1090
    %v1092 = vshll.u32 2475754826, %v1086
    %v1093 = vshrl.u32 2131351028, %v1087
    %v1094 = vor.u32 %v1092, %v1093
    %v1095 = vshll.u32 2131351028, %v1086
    %v1096 = vshrl.u32 2102212464, %v1087
    %v1097 = vor.u32 %v1095, %v1096
    %v1098 = vshll.u32 2102212464, %v1086
    %v1099 = vshrl.u32 920167782, %v1087
    %v1100 = vor.u32 %v1098, %v1099
    %v1101 = vshll.u32 920167782, %v1086
    %v1102 = vshrl.u32 1326507024, %v1087
    %v1103 = vor.u32 %v1101, %v1102
    %vm1104 = vcmp.lt.s32.totalorder %v1085, 1
    %vm1105 = vcmp.lt.s32.totalorder %v1085, 2
    %vm1106 = vcmp.lt.s32.totalorder %v1085, 3
    %vm1107 = vcmp.lt.s32.totalorder %v1085, 4
    %v1108 = vsel %vm1104, %v1088, %v1091
    %v1109 = vsel %vm1107, %v1097, 2102212464
    %v1110 = vsel %vm1106, %v1094, %v1109
    %v1111 = vsel %vm1105, %v1108, %v1110
    %v1112 = vsel %vm1104, %v1091, %v1094
    %v1113 = vsel %vm1107, %v1100, 920167782
    %v1114 = vsel %vm1106, %v1097, %v1113
    %v1115 = vsel %vm1105, %v1112, %v1114
    %v1116 = vsel %vm1104, %v1094, %v1097
    %v1117 = vsel %vm1107, %v1103, 1326507024
    %v1118 = vsel %vm1106, %v1100, %v1117
    %v1119 = vsel %vm1105, %v1116, %v1118
    %v1120 = vshll.u32 %v1080, 8
    %v1121 = vmul.u32.u64.compose %v1120, %v1119
    %v1122 = vextract.low.u32 %v1121
    %v1123 = vextract.high.u32 %v1121
    %v1124 = vmul.u32.u64.compose %v1120, %v1115
    %v1125 = vextract.low.u32 %v1124
    %v1126 = vextract.high.u32 %v1124
    %v1127 = vmul.u32 %v1120, %v1111
    %v1128 = vadd.s32 %v1123, %v1125
    %vm1129 = vc.u32 %v1123, %v1125
    %v1130 = vadd.s32 %v1126, 1
    %v1131 = vsel %vm1129, %v1130, %v1126
    %v1132 = vadd.s32 %v1127, %v1131
    %v1133 = vadd.s32 %v1132, 536870912
    %v1134 = vshrl.u32 %v1133, 30
    %v1135 = vshll.u32 %v1134, 30
    %v1136 = vsub.s32 %v1132, %v1135
    %vm1137 = vcmp.lt.s32.totalorder %v1136, 0
    %v1138 = vsub.s32 0, %v1136
    %v1139 = vsel %vm1137, %v1138, %v1136
    %v1140 = vclz %v1139
    %v1141 = vsub.s32 %v1140, 2
    %vm1142 = vcmp.gt.s32.totalorder 0, %v1141
    %v1143 = vsel %vm1142, 0, %v1141
    %v1144 = vsub.s32 32, %v1143
    %v1145 = vshll.u32 %v1136, %v1143
    %v1146 = vshrl.u32 %v1128, %v1144
    %v1147 = vor.u32 %v1145, %v1146
    %v1148 = vsub.s32 4294967266, %v1143
    %v1149 = vadd.s32 %v1148, 127
    %v1150 = vshll.u32 %v1149, 23
    %v1151 = vor.u32 4788187, %v1150
    %v1152 = vand.u32 2147483647, %v1151
    %v1154 = vcvt.s32.f32 %v1147
    %v1155 = vmul.f32 %v1154, %v1152
    %v1156 = vxor.u32 %v1155, 2147483648
    %v1157 = vsel %vm1074, %v1156, %v1155
    %v1158 = vsub.s32 4, %v1134
    %v1159 = vsel %vm1074, %v1158, %v1134
    %v1160 = vsel %vm1073, %v1070, %v1157
    %v1161 = vsel %vm1073, 0, %v1159
    %v1162 = vcosq.f32.pop %v1160
    %v1163 = vsinq.f32.pop %v1160
    %vm1164 = vweird.f32 %v1070
    %v1165 = vand.u32 %v1161, 3
    %vm1166 = vcmp.lt.s32.totalorder %v1165, 2
    %vm1167 = vcmp.eq.s32.totalorder %v1165, 0
    %v1168 = vxor.u32 %v1163, 2147483648
    %v1169 = vsel %vm1167, %v1162, %v1168
    %vm1170 = vcmp.eq.s32.totalorder %v1165, 2
    %v1171 = vxor.u32 %v1162, 2147483648
    %v1172 = vsel %vm1170, %v1171, %v1163
    %v1173 = vsel %vm1166, %v1169, %v1172
    %v1174 = vsel %vm1164, nan, %v1173
    %v1175 = vmul.f32 %v1071, %v1174
    %s1176 = scalar_lea.vmem [#allocation2], 12
    %v1177 = vld [vmem:[%s1176] sm:$0x3]
    %v1178 = vmul.f32 %v1177, %v1060
    %v1179 = vmul.f32 %v1175, %v1178
    %v1180 = vadd.f32 %v1052, %v1179
    %v1181 = vmul.f32 %v287, 8.0
    %v1182 = vmul.f32 %v1181, 0.5
    %v1183 = vadd.f32 %v1054, %v1182
    %v1184 = vmul.f32 %v201, 8.0
    %vm1185 = vcmp.lt.f32.partialorder %v1184, 8000.0
    %v1186 = vsel %vm1185, 1, 0
    %v1187 = vcvt.s32.f32 %v1186
    %v1188 = vadd.f32 %v1187, 0.0001
    %v1189 = vmul.f32 %v1183, 0.15915494
    %v1190 = vfloor.f32 %v1189
    %v1191 = vmul.f32 %v1190, 6.2831855
    %v1192 = vsub.f32 %v1183, %v1191
    %v1193 = vmul.f32 %v1192, 0.15915494
    %vm1194 = vcmp.lt.f32.partialorder %v1193, 0.7
    %v1195 = vmul.f32 %v1193, 4.4879894
    %v1196 = vsub.f32 %v1193, 0.7
    %v1197 = vmul.f32 %v1196, 10.471975
    %v1198 = vsel %vm1194, %v1195, %v1197
    %v1199 = vsel %vm1194, -0.5, 0.5
    %v1200 = vand.u32 2147483647, %v1198
    %vm1201 = vcmp.le.f32.partialorder %v1200, 0.7853982
    %vm1202 = vcmp.lt.s32.totalorder %v1198, 0
    %v1203 = vand.u32 %v1198, 2139095040
    %v1204 = vshrl.u32 %v1203, 23
    %v1205 = vsub.s32 %v1204, 127
    %v1206 = vand.u32 2147483647, %v1198
    %v1207 = vand.u32 %v1206, 8388607
    %v1208 = vor.u32 %v1207, 8388608
    %v1209 = vsub.s32 0, %v1208
    %v1210 = vadd.s32 %v1205, 1
    %vm1211 = vcmp.gt.s32.totalorder %v1210, 0
    %v1212 = vsel %vm1211, %v1210, 0
    %v1213 = vshrl.u32 %v1212, 5
    %v1214 = vand.u32 %v1212, 31
    %v1215 = vsub.s32 32, %v1214
    %v1216 = vshrl.u32 683565275, %v1215
    %v1217 = vshll.u32 683565275, %v1214
    %v1218 = vshrl.u32 2475754826, %v1215
    %v1219 = vor.u32 %v1217, %v1218
    %v1220 = vshll.u32 2475754826, %v1214
    %v1221 = vshrl.u32 2131351028, %v1215
    %v1222 = vor.u32 %v1220, %v1221
    %v1223 = vshll.u32 2131351028, %v1214
    %v1224 = vshrl.u32 2102212464, %v1215
    %v1225 = vor.u32 %v1223, %v1224
    %v1226 = vshll.u32 2102212464, %v1214
    %v1227 = vshrl.u32 920167782, %v1215
    %v1228 = vor.u32 %v1226, %v1227
    %v1229 = vshll.u32 920167782, %v1214
    %v1230 = vshrl.u32 1326507024, %v1215
    %v1231 = vor.u32 %v1229, %v1230
    %vm1232 = vcmp.lt.s32.totalorder %v1213, 1
    %vm1233 = vcmp.lt.s32.totalorder %v1213, 2
    %vm1234 = vcmp.lt.s32.totalorder %v1213, 3
    %vm1235 = vcmp.lt.s32.totalorder %v1213, 4
    %v1236 = vsel %vm1232, %v1216, %v1219
    %v1237 = vsel %vm1235, %v1225, 2102212464
    %v1238 = vsel %vm1234, %v1222, %v1237
    %v1239 = vsel %vm1233, %v1236, %v1238
    %v1240 = vsel %vm1232, %v1219, %v1222
    %v1241 = vsel %vm1235, %v1228, 920167782
    %v1242 = vsel %vm1234, %v1225, %v1241
    %v1243 = vsel %vm1233, %v1240, %v1242
    %v1244 = vsel %vm1232, %v1222, %v1225
    %v1245 = vsel %vm1235, %v1231, 1326507024
    %v1246 = vsel %vm1234, %v1228, %v1245
    %v1247 = vsel %vm1233, %v1244, %v1246
    %v1248 = vshll.u32 %v1208, 8
    %v1249 = vmul.u32.u64.compose %v1248, %v1247
    %v1250 = vextract.low.u32 %v1249
    %v1251 = vextract.high.u32 %v1249
    %v1252 = vmul.u32.u64.compose %v1248, %v1243
    %v1253 = vextract.low.u32 %v1252
    %v1254 = vextract.high.u32 %v1252
    %v1255 = vmul.u32 %v1248, %v1239
    %v1256 = vadd.s32 %v1251, %v1253
    %vm1257 = vc.u32 %v1251, %v1253
    %v1258 = vadd.s32 %v1254, 1
    %v1259 = vsel %vm1257, %v1258, %v1254
    %v1260 = vadd.s32 %v1255, %v1259
    %v1261 = vadd.s32 %v1260, 536870912
    %v1262 = vshrl.u32 %v1261, 30
    %v1263 = vshll.u32 %v1262, 30
    %v1264 = vsub.s32 %v1260, %v1263
    %vm1265 = vcmp.lt.s32.totalorder %v1264, 0
    %v1266 = vsub.s32 0, %v1264
    %v1267 = vsel %vm1265, %v1266, %v1264
    %v1268 = vclz %v1267
    %v1269 = vsub.s32 %v1268, 2
    %vm1270 = vcmp.gt.s32.totalorder 0, %v1269
    %v1271 = vsel %vm1270, 0, %v1269
    %v1272 = vsub.s32 32, %v1271
    %v1273 = vshll.u32 %v1264, %v1271
    %v1274 = vshrl.u32 %v1256, %v1272
    %v1275 = vor.u32 %v1273, %v1274
    %v1276 = vsub.s32 4294967266, %v1271
    %v1277 = vadd.s32 %v1276, 127
    %v1278 = vshll.u32 %v1277, 23
    %v1279 = vor.u32 4788187, %v1278
    %v1280 = vand.u32 2147483647, %v1279
    %v1282 = vcvt.s32.f32 %v1275
    %v1283 = vmul.f32 %v1282, %v1280
    %v1284 = vxor.u32 %v1283, 2147483648
    %v1285 = vsel %vm1202, %v1284, %v1283
    %v1286 = vsub.s32 4, %v1262
    %v1287 = vsel %vm1202, %v1286, %v1262
    %v1288 = vsel %vm1201, %v1198, %v1285
    %v1289 = vsel %vm1201, 0, %v1287
    %v1290 = vcosq.f32.pop %v1288
    %v1291 = vsinq.f32.pop %v1288
    %vm1292 = vweird.f32 %v1198
    %v1293 = vand.u32 %v1289, 3
    %vm1294 = vcmp.lt.s32.totalorder %v1293, 2
    %vm1295 = vcmp.eq.s32.totalorder %v1293, 0
    %v1296 = vxor.u32 %v1291, 2147483648
    %v1297 = vsel %vm1295, %v1290, %v1296
    %vm1298 = vcmp.eq.s32.totalorder %v1293, 2
    %v1299 = vxor.u32 %v1290, 2147483648
    %v1300 = vsel %vm1298, %v1299, %v1291
    %v1301 = vsel %vm1294, %v1297, %v1300
    %v1302 = vsel %vm1292, nan, %v1301
    %v1303 = vmul.f32 %v1199, %v1302
    %s1304 = scalar_lea.vmem [#allocation2], 14
    %v1305 = vld [vmem:[%s1304] sm:$0x3]
    %v1306 = vmul.f32 %v1305, %v1188
    %v1307 = vmul.f32 %v1303, %v1306
    %v1308 = vadd.f32 %v1180, %v1307
    %v1309 = vld [vmem:[#allocation7] sm:$0xff]
    %v1310 = vld [vmem:[#allocation7 + $0x8] sm:$0xff]
    %v1311 = vld [vmem:[#allocation7 + $0x10] sm:$0xff]
    %v1312 = vld [vmem:[#allocation7 + $0x18] sm:$0xff]
    %v1313 = vld [vmem:[#allocation7 + $0x20] sm:$0xff]
    %v1314 = vld [vmem:[#allocation7 + $0x28] sm:$0xff]
    %v1315 = vld [vmem:[#allocation7 + $0x30] sm:$0xff]
    %v1316 = vld [vmem:[#allocation7 + $0x38] sm:$0xff]
    %v1318 = vsel %vm216, %v1308, 0
    %1320 = vmatprep.subr.mxu0 0.0
    %1321 = vmatpush1.msra.mxu0 %v1309
    %1322 = vmatprep.subr.mxu0 0.0
    %1323 = vmatpush1.msra.mxu0 %v1310
    %1324 = vmatprep.subr.mxu0 0.0
    %1325 = vmatpush1.msra.mxu0 %v1311
    %1326 = vmatprep.subr.mxu0 0.0
    %1327 = vmatpush1.msra.mxu0 %v1312
    %1328 = vmatprep.subr.mxu0 0.0
    %1329 = vmatpush1.msra.mxu0 %v1313
    %1330 = vmatprep.subr.mxu0 0.0
    %1331 = vmatpush1.msra.mxu0 %v1314
    %1332 = vmatprep.subr.mxu0 0.0
    %1333 = vmatpush1.msra.mxu0 %v1315
    %1334 = vmatprep.subr.mxu0 0.0
    %1335 = vmatpush1.msra.mxu0 %v1316
    %1336 = vmatprep.subr.mxu0 0.0
    %1337 = vmatpush1.msra.mxu0 0.0
    %1338 = vmatprep.subr.mxu0 0.0
    %1339 = vmatpush1.msra.mxu0 0.0
    %1340 = vmatprep.subr.mxu0 0.0
    %1341 = vmatpush1.msra.mxu0 0.0
    %1342 = vmatprep.subr.mxu0 0.0
    %1343 = vmatpush1.msra.mxu0 0.0
    %1344 = vmatprep.subr.mxu0 0.0
    %1345 = vmatpush1.msra.mxu0 0.0
    %1346 = vmatprep.subr.mxu0 0.0
    %1347 = vmatpush1.msra.mxu0 0.0
    %1348 = vmatprep.subr.mxu0 0.0
    %1349 = vmatpush1.msra.mxu0 0.0
    %1350 = vmatprep.subr.mxu0 0.0
    %1351 = vmatpush1.msra.mxu0 0.0
    %1352 = vmatprep.subr.mxu0 0.0
    %1353 = vmatpush1.msra.mxu0 0.0
    %1354 = vmatprep.subr.mxu0 0.0
    %1355 = vmatpush1.msra.mxu0 0.0
    %1356 = vmatprep.subr.mxu0 0.0
    %1357 = vmatpush1.msra.mxu0 0.0
    %1358 = vmatprep.subr.mxu0 0.0
    %1359 = vmatpush1.msra.mxu0 0.0
    %1360 = vmatprep.subr.mxu0 0.0
    %1361 = vmatpush1.msra.mxu0 0.0
    %1362 = vmatprep.subr.mxu0 0.0
    %1363 = vmatpush1.msra.mxu0 0.0
    %1364 = vmatprep.subr.mxu0 0.0
    %1365 = vmatpush1.msra.mxu0 0.0
    %1366 = vmatprep.subr.mxu0 0.0
    %1367 = vmatpush1.msra.mxu0 0.0
    %1368 = vmatprep.subr.mxu0 0.0
    %1369 = vmatpush1.msra.mxu0 0.0
    %1370 = vmatprep.subr.mxu0 0.0
    %1371 = vmatpush1.msra.mxu0 0.0
    %1372 = vmatprep.subr.mxu0 0.0
    %1373 = vmatpush1.msra.mxu0 0.0
    %1374 = vmatprep.subr.mxu0 0.0
    %1375 = vmatpush1.msra.mxu0 0.0
    %1376 = vmatprep.subr.mxu0 0.0
    %1377 = vmatpush1.msra.mxu0 0.0
    %1378 = vmatprep.subr.mxu0 0.0
    %1379 = vmatpush1.msra.mxu0 0.0
    %1380 = vmatprep.subr.mxu0 0.0
    %1381 = vmatpush1.msra.mxu0 0.0
    %1382 = vmatprep.subr.mxu0 0.0
    %1383 = vmatpush1.msra.mxu0 0.0
    %1384 = vmatprep.mubr.f32.mxu0 0.0
    %1385 = vmatmul.mubr.f32.gmra.mrb[0].mxu0 %v1318
    %v1386 = vpop.f32.mrb[0].mxu0
    %v1387 = vadd.f32 0.0, %v1386
    %v1388 = vpop.f32.mrb[0].mxu0
    %1389 = vdwg.mxu0
    %v1390 = vld [vmem:[#allocation8] sm:$0xff]
    %v1391 = vld [vmem:[#allocation8 + $0x8] sm:$0xff]
    %v1392 = vld [vmem:[#allocation8 + $0x10] sm:$0xff]
    %v1393 = vld [vmem:[#allocation8 + $0x18] sm:$0xff]
    %v1394 = vld [vmem:[#allocation8 + $0x20] sm:$0xff]
    %v1395 = vld [vmem:[#allocation8 + $0x28] sm:$0xff]
    %v1396 = vld [vmem:[#allocation8 + $0x30] sm:$0xff]
    %v1397 = vld [vmem:[#allocation8 + $0x38] sm:$0xff]
    %v1399 = vsel %vm216, %v85, 0
    %1401 = vmatprep.subr.mxu0 0.0
    %1402 = vmatpush1.msra.mxu0 %v1390
    %1403 = vmatprep.subr.mxu0 0.0
    %1404 = vmatpush1.msra.mxu0 %v1391
    %1405 = vmatprep.subr.mxu0 0.0
    %1406 = vmatpush1.msra.mxu0 %v1392
    %1407 = vmatprep.subr.mxu0 0.0
    %1408 = vmatpush1.msra.mxu0 %v1393
    %1409 = vmatprep.subr.mxu0 0.0
    %1410 = vmatpush1.msra.mxu0 %v1394
    %1411 = vmatprep.subr.mxu0 0.0
    %1412 = vmatpush1.msra.mxu0 %v1395
    %1413 = vmatprep.subr.mxu0 0.0
    %1414 = vmatpush1.msra.mxu0 %v1396
    %1415 = vmatprep.subr.mxu0 0.0
    %1416 = vmatpush1.msra.mxu0 %v1397
    %1417 = vmatprep.subr.mxu0 0.0
    %1418 = vmatpush1.msra.mxu0 0.0
    %1419 = vmatprep.subr.mxu0 0.0
    %1420 = vmatpush1.msra.mxu0 0.0
    %1421 = vmatprep.subr.mxu0 0.0
    %1422 = vmatpush1.msra.mxu0 0.0
    %1423 = vmatprep.subr.mxu0 0.0
    %1424 = vmatpush1.msra.mxu0 0.0
    %1425 = vmatprep.subr.mxu0 0.0
    %1426 = vmatpush1.msra.mxu0 0.0
    %1427 = vmatprep.subr.mxu0 0.0
    %1428 = vmatpush1.msra.mxu0 0.0
    %1429 = vmatprep.subr.mxu0 0.0
    %1430 = vmatpush1.msra.mxu0 0.0
    %1431 = vmatprep.subr.mxu0 0.0
    %1432 = vmatpush1.msra.mxu0 0.0
    %1433 = vmatprep.subr.mxu0 0.0
    %1434 = vmatpush1.msra.mxu0 0.0
    %1435 = vmatprep.subr.mxu0 0.0
    %1436 = vmatpush1.msra.mxu0 0.0
    %1437 = vmatprep.subr.mxu0 0.0
    %1438 = vmatpush1.msra.mxu0 0.0
    %1439 = vmatprep.subr.mxu0 0.0
    %1440 = vmatpush1.msra.mxu0 0.0
    %1441 = vmatprep.subr.mxu0 0.0
    %1442 = vmatpush1.msra.mxu0 0.0
    %1443 = vmatprep.subr.mxu0 0.0
    %1444 = vmatpush1.msra.mxu0 0.0
    %1445 = vmatprep.subr.mxu0 0.0
    %1446 = vmatpush1.msra.mxu0 0.0
    %1447 = vmatprep.subr.mxu0 0.0
    %1448 = vmatpush1.msra.mxu0 0.0
    %1449 = vmatprep.subr.mxu0 0.0
    %1450 = vmatpush1.msra.mxu0 0.0
    %1451 = vmatprep.subr.mxu0 0.0
    %1452 = vmatpush1.msra.mxu0 0.0
    %1453 = vmatprep.subr.mxu0 0.0
    %1454 = vmatpush1.msra.mxu0 0.0
    %1455 = vmatprep.subr.mxu0 0.0
    %1456 = vmatpush1.msra.mxu0 0.0
    %1457 = vmatprep.subr.mxu0 0.0
    %1458 = vmatpush1.msra.mxu0 0.0
    %1459 = vmatprep.subr.mxu0 0.0
    %1460 = vmatpush1.msra.mxu0 0.0
    %1461 = vmatprep.subr.mxu0 0.0
    %1462 = vmatpush1.msra.mxu0 0.0
    %1463 = vmatprep.subr.mxu0 0.0
    %1464 = vmatpush1.msra.mxu0 0.0
    %1465 = vmatprep.mubr.f32.mxu0 0.0
    %1466 = vmatmul.mubr.f32.gmra.mrb[0].mxu0 %v1399
    %v1467 = vpop.f32.mrb[0].mxu0
    %v1468 = vadd.f32 0.0, %v1467
    %v1469 = vpop.f32.mrb[0].mxu0
    %1470 = vdwg.mxu0
    %vm1471 = vcmask 517120
    %v1472 = vsel %vm1471, %v1468, 0.0
    %1473 = vadd.xlane.f32.xlu0 %v1472
    %v1474 = vpop.xlane.xlu0 %1473
    %v1475 = vrcp.pop 64.0
    %v1476 = vmul.f32 %v1474, %v1475
    %v1477 = vsub.f32 %v1468, %v1476
    %v1478 = vmul.f32 %v1477, %v1477
    %v1479 = vsel %vm1471, %v1478, 0.0
    %1480 = vadd.xlane.f32.xlu0 %v1479
    %v1481 = vpop.xlane.xlu0 %1480
    %v1482 = vmul.f32 %v1481, 0.015873017
    %v1483 = vrsqrt.pop %v1482
    %v1484 = vmul.f32 %v1482, %v1483
    %vm1485 = vcmp.eq.f32.partialorder %v1482, inf
    %v1486 = vsel %vm1485, %v1482, %v1484
    %vm1487 = vcmp.eq.f32.partialorder %v1482, 0.0
    %v1488 = vand.u32 %v1482, 2147483648
    %v1489 = vsel %vm1487, %v1488, %v1486
    %v1490 = vadd.f32 %v1489, 1e-08
    %v1491 = vrcp.pop %v1490
    %v1492 = vmul.f32 %v1477, %v1491
    %v1493 = vmul.f32 %v1492, 0.1
    %v1494 = vsel %vm199, 1, 0
    %v1495 = vcvt.s32.f32 %v1494
    %v1496 = vmul.f32 %v1387, %v1495
    %v1497 = vadd.f32 %v1496, %v1493
    %1498 = vst.msk [vmem:[#allocation10] sm:$0x3] %vm1471, %v1497
    %1500 = vrot.lane.b32.xlu0 %v297, 65
    %v1501 = vpop.permute.xlu0 %1500
    %vm1503 = vcmask 1024
    %1504 = vst.msk [vmem:[%s8] sm:$0x3] %vm1503, %v1501
    // Predicated region
    $region46: #{tpu_custom_call.1} parent=1 // pred_check
      _
    $region47: #{tpu_custom_call.1} parent=1 // pred_check_branch
      %1506 = sbr.rel (0) target = $region49
    $region48: #{tpu_custom_call.1} parent=1 // pred_region
      %s1508 = ssub.s32 32, 32
      %1509 = vsyncadd [#allocation4], %s1508
      %s1511 = sshll.u32 [#allocation10], 4
      %s1512 = int_to_ptr.vmem [resolvable:$true] %s1511
      %1514 = dma.vmem_to_hbm [thread:$0]  %s1512, 32, %s7, [#allocation4]
    $region49: #{tpu_custom_call.1} parent=1 // pred_fallthru
      _
    // Predicated region
    $region50: #{tpu_custom_call.1} parent=1 // pred_check
      _
    $region51: #{tpu_custom_call.1} parent=1 // pred_check_branch
      %1516 = sbr.rel (0) target = $region53
    $region52: #{tpu_custom_call.1} parent=1 // pred_region
      _
    $region53: #{tpu_custom_call.1} parent=1 // pred_fallthru
      _
    // Predicated region
    $region54: #{tpu_custom_call.1} parent=1 // pred_check
      _
    $region55: #{tpu_custom_call.1} parent=1 // pred_check_branch
      %1518 = sbr.rel (0) target = $region57
    $region56: #{tpu_custom_call.1} parent=1 // pred_region
      %1519 = dma.done [#allocation4], 32
    $region57: #{tpu_custom_call.1} parent=1 // pred_fallthru
      _
    // Predicated region
    $region58: #{tpu_custom_call.1} parent=1 // pred_check
      _
    $region59: #{tpu_custom_call.1} parent=1 // pred_check_branch
      %1521 = sbr.rel (0) target = $region61
    $region60: #{tpu_custom_call.1} parent=1 // pred_region
      _
    $region61: #{tpu_custom_call.1} parent=1 // pred_fallthru
      _
    %1522 = vsyncpa [#allocation3], 1
    %1523 = vsyncpa [#allocation6], 1
    %1524 = vsyncpa [#allocation9], 1
    %1525 = vsyncpa [#allocation4], 1

</llo_original>
